<compile_context>
chip_gen: v6e
topology: v6e:2x2x1
jax: 0.10.0
libtpu: 0.0.40
codegen_flags: <defaults>
</compile_context>

<pallas_src>
import functools

import jax
import jax.numpy as jnp
from jax import lax
from jax.experimental import pallas as pl
from jax.experimental.pallas import tpu as pltpu


# ----------------------------- model-size constants -------------------------
H_IN = W_IN = 36                 # small stand-in for the original 224x224
OH1, OW1 = H_IN - 2, W_IN - 2    # 34, 34  conv1 output
OH2, OW2 = OH1 - 2, OW1 - 2      # 32, 32  conv2 output
HP, WP = OH2 // 2, OW2 // 2      # 16, 16  pooled
FLAT = 32 * HP * WP              # 8192 (stands in for the hard-coded 387200)
CIN_PAD = 8                      # pad 3 input channels -> 8 (one sublane tile)

# fc1 K-reduction tile (multiple of 128).  bf16 weight tile = TK*128*2 bytes,
# double buffered; keep well under scoped VMEM (v5e 16 MiB default, v6e up to
# 128 MiB, v7x 64 MiB physical).  At FLAT=387200 a TK of 2048-4096 still fits
# everywhere.
FC1_TK = 2048


# ----------------------------- Pallas kernels ------------------------------

def _conv_pool_kernel(cov_ref, x_ref, w0_ref, w1_ref, k2_ref, b2_ref,
                      out_ref, h1_ref):
    """Fused: (W0+cov*W1) -> conv1+ReLU -> conv2+bias+ReLU -> 2x2 maxpool.

    Layouts (spatial width in lanes, channels in sublanes):
      x_ref   (H, CIN_PAD, W)  input image, channels zero-padded 3->8
      w0/w1   (16, 72)         hybrid conv1 weights, columns ordered (kh,kw,ci)
      k2_ref  (32, 144)        conv2 weights,        columns ordered (kh,kw,ci)
      b2_ref  (32, 1)          conv2 bias
      out_ref (HP, 32, WP)     pooled activations, (row, channel, col)
      h1_ref  (OH1, 16, OW1)   conv1+ReLU activations (VMEM scratch)
    """
    oh1, _, ow1 = h1_ref.shape
    hp, _, wp = out_ref.shape
    ow2 = ow1 - 2

    # Hoisted once: hybrid weight combine, bias, pooling selection matrices.
    cov = cov_ref[0]
    k1 = w0_ref[...] + cov * w1_ref[...]                      # (16, 72)
    k2 = k2_ref[...]                                          # (32, 144)
    b2 = b2_ref[...]                                          # (32, 1)
    rows = lax.broadcasted_iota(jnp.int32, (ow2, wp), 0)
    cols = lax.broadcasted_iota(jnp.int32, (ow2, wp), 1)
    sel_even = (rows == 2 * cols).astype(jnp.float32)         # picks cols 0,2,..
    sel_odd = (rows == 2 * cols + 1).astype(jnp.float32)      # picks cols 1,3,..

    # ---- conv1 + ReLU: one (16,72) @ (72,OW1) matmul per output row --------
    def conv1_row(i, carry):
        slabs = [x_ref[i + kh, :, kw:kw + ow1]                # (CIN_PAD, OW1)
                 for kh in range(3) for kw in range(3)]
        patch = jnp.concatenate(slabs, axis=0)                # (72, OW1)
        h1_ref[i] = jnp.maximum(
            jnp.dot(k1, patch, preferred_element_type=jnp.float32), 0.0)
        return carry

    lax.fori_loop(0, oh1, conv1_row, 0)

    # ---- conv2 + bias + ReLU fused with the 2x2/2 max-pool -----------------
    def conv2_row(r):
        slabs = [h1_ref[r + kh, :, kw:kw + ow2]               # (16, OW2)
                 for kh in range(3) for kw in range(3)]
        patch = jnp.concatenate(slabs, axis=0)                # (144, OW2)
        out = jnp.dot(k2, patch, preferred_element_type=jnp.float32) + b2
        return jnp.maximum(out, 0.0)                          # (32, OW2)

    def pool_row(ph, carry):
        r0 = 2 * ph
        vmax = jnp.maximum(conv2_row(r0), conv2_row(r0 + 1))  # (32, OW2)
        # horizontal stride-2 max via 0/1 selection matmuls (exact: weights 0/1)
        out_ref[ph] = jnp.maximum(
            jnp.dot(vmax, sel_even, preferred_element_type=jnp.float32),
            jnp.dot(vmax, sel_odd, preferred_element_type=jnp.float32))
        return carry

    lax.fori_loop(0, hp, pool_row, 0)


def _fc_kernel(x_ref, w1_ref, b1_ref, w2_ref, b2_ref, o_ref, acc_ref):
    """Gridded fc1 K-reduction (bf16 weights, f32 accumulate) + ReLU + fc2."""
    k = pl.program_id(0)

    @pl.when(k == 0)
    def _init():
        acc_ref[...] = jnp.zeros_like(acc_ref)

    x_bf16 = x_ref[...].astype(jnp.bfloat16)                  # (1, TK)
    acc_ref[...] += jnp.dot(x_bf16, w1_ref[...],
                            preferred_element_type=jnp.float32)

    @pl.when(k == pl.num_programs(0) - 1)
    def _finalize():
        hidden = jnp.maximum(acc_ref[...] + b1_ref[...], 0.0)     # (1, 128)
        o_ref[...] = (jnp.dot(hidden, w2_ref[...],
                              preferred_element_type=jnp.float32)
                      + b2_ref[...])                              # (1, 128) padded


# ----------------------------- kernel wrappers ------------------------------

def _vmem():
    return pl.BlockSpec(memory_space=pltpu.MemorySpace.VMEM)


def _smem():
    return pl.BlockSpec(memory_space=pltpu.MemorySpace.SMEM)


def _conv_pool(cov_arr, x_hcw, w0m, w1m, k2m, b2m):
    h, _, w = x_hcw.shape
    oh1, ow1 = h - 2, w - 2
    hp, wp = (oh1 - 2) // 2, (ow1 - 2) // 2
    return pl.pallas_call(
        _conv_pool_kernel,
        out_shape=jax.ShapeDtypeStruct((hp, 32, wp), jnp.float32),
        in_specs=[_smem(), _vmem(), _vmem(), _vmem(), _vmem(), _vmem()],
        out_specs=_vmem(),
        scratch_shapes=[pltpu.VMEM((oh1, 16, ow1), jnp.float32)],
        compiler_params=pltpu.CompilerParams(vmem_limit_bytes=32 * 1024 * 1024),
    )(cov_arr, x_hcw, w0m, w1m, k2m, b2m)


def _fc(flat, w1m, b1m, w2m, b2m, tk):
    flat_k = flat.shape[1]
    assert flat_k % tk == 0, "FC1 tile must divide the flattened width"
    return pl.pallas_call(
        _fc_kernel,
        out_shape=jax.ShapeDtypeStruct((1, 128), jnp.float32),
        grid=(flat_k // tk,),
        in_specs=[
            pl.BlockSpec((1, tk), lambda k: (0, k)),        # activations
            pl.BlockSpec((tk, 128), lambda k: (k, 0)),      # fc1 weight stream (bf16)
            pl.BlockSpec((1, 128), lambda k: (0, 0)),       # fc1 bias (resident)
            pl.BlockSpec((128, 128), lambda k: (0, 0)),     # fc2 weight, lane-padded
            pl.BlockSpec((1, 128), lambda k: (0, 0)),       # fc2 bias, lane-padded
        ],
        out_specs=pl.BlockSpec((1, 128), lambda k: (0, 0)),
        scratch_shapes=[pltpu.VMEM((1, 128), jnp.float32)],
        compiler_params=pltpu.CompilerParams(
            dimension_semantics=("arbitrary",),             # K-reduction carry
            vmem_limit_bytes=32 * 1024 * 1024),
    )(flat, w1m, b1m, w2m, b2m)


# ------------------------------ forward pass --------------------------------

@functools.partial(jax.jit, static_argnames=("cov",))
def hybrid_convnet_forward(prep, x_nchw, cov):
    """Mirrors HybridConvNet.forward(x, cov).  x_nchw: (1, 3, H, W); cov static."""
    assert x_nchw.shape[0] == 1, "module flattens with view(1, -1); batch must be 1"
    if cov == 0:
        w0m, w1m = prep["hc1_W0m"], prep["hc1_W1m"]
    elif cov == 1:
        w0m, w1m = prep["hc2_W0m"], prep["hc2_W1m"]
    else:
        return x_nchw       # mirrors PyTorch: neither branch taken, x returned

    # (1,3,H,W) -> (H, CIN_PAD, W): width in lanes, zero-padded channels in sublanes
    x_hcw = jnp.transpose(x_nchw[0].astype(jnp.float32), (1, 0, 2))
    x_hcw = jnp.pad(x_hcw, ((0, 0), (0, CIN_PAD - x_hcw.shape[1]), (0, 0)))

    cov_arr = jnp.full((1,), float(cov), jnp.float32)
    pooled = _conv_pool(cov_arr, x_hcw, w0m, w1m,
                        prep["conv2_wm"], prep["conv2_bm"])       # (HP, 32, WP)

    # Contiguous (Hp, C, Wp) flatten; the fc1 weight was pre-permuted to match
    # PyTorch's (C, Hp, Wp) view(1, -1) order exactly.
    flat = pooled.reshape(1, -1)
    out_padded = _fc(flat, prep["fc1_wm"], prep["fc1_bm"],
                     prep["fc2_wm"], prep["fc2_bm"], FC1_TK)      # (1, 128)
    return out_padded[:, :2]


# ------------------------- parameters & preprocessing ------------------------

def init_params(key):
    """Parameters in PyTorch layouts (as the nn.Module would hold them)."""
    ks = jax.random.split(key, 10)

    def kaiming(k, shape, fan_out):
        return (2.0 / fan_out) ** 0.5 * jax.random.normal(k, shape, jnp.float32)

    fo_h = 16 * 3 * 3
    fi_c2 = 16 * 3 * 3
    return {
        # Hybrid_Conv2d weights, PyTorch layout (Cout, Cin, KH, KW); no bias.
        "hc1_W0": kaiming(ks[0], (16, 3, 3, 3), fo_h),
        "hc1_W1": kaiming(ks[1], (16, 3, 3, 3), fo_h),
        "hc2_W0": kaiming(ks[2], (16, 3, 3, 3), fo_h),
        "hc2_W1": kaiming(ks[3], (16, 3, 3, 3), fo_h),
        # nn.Conv2d(16, 32, 3)
        "conv2_w": (1.0 / fi_c2 ** 0.5) * jax.random.normal(ks[4], (32, 16, 3, 3), jnp.float32),
        "conv2_b": (1.0 / fi_c2 ** 0.5) * jax.random.normal(ks[5], (32,), jnp.float32),
        # nn.Linear(FLAT, 128), nn.Linear(128, 2) -- PyTorch (out, in) layout
        "fc1_w": (1.0 / FLAT ** 0.5) * jax.random.normal(ks[6], (128, FLAT), jnp.float32),
        "fc1_b": (1.0 / FLAT ** 0.5) * jax.random.normal(ks[7], (128,), jnp.float32),
        "fc2_w": (1.0 / 128 ** 0.5) * jax.random.normal(ks[8], (2, 128), jnp.float32),
        "fc2_b": (1.0 / 128 ** 0.5) * jax.random.normal(ks[9], (2,), jnp.float32),
    }


def prepare_params(p):
    """One-time host-side repack of PyTorch-layout params into kernel layouts."""
    def conv_mat(w, cin_pad):
        # (Cout, Cin, KH, KW) -> (Cout, KH*KW*cin_pad), column order (kh, kw, ci)
        cout, cin, khs, kws = w.shape
        w = jnp.transpose(w, (0, 2, 3, 1))                        # (Cout, KH, KW, Cin)
        w = jnp.pad(w, ((0, 0), (0, 0), (0, 0), (0, cin_pad - cin)))
        return w.reshape(cout, khs * kws * cin_pad).astype(jnp.float32)

    # fc1: PyTorch flattens pooled maps in (C, Hp, Wp) order; the conv kernel
    # emits (Hp, C, Wp).  Absorb the permutation into the weight (done once)
    # and store it bf16 so the gridded fc1 matvec streams half the HBM bytes.
    fc1 = p["fc1_w"].reshape(128, 32, HP, WP)                     # (out, C, Hp, Wp)
    fc1 = jnp.transpose(fc1, (2, 1, 3, 0)).reshape(FLAT, 128)     # (Hp*C*Wp, out)
    fc2 = jnp.zeros((128, 128), jnp.float32).at[:, :2].set(p["fc2_w"].T)
    fc2_b = jnp.zeros((1, 128), jnp.float32).at[:, :2].set(p["fc2_b"])
    return {
        "hc1_W0m": conv_mat(p["hc1_W0"], CIN_PAD),
        "hc1_W1m": conv_mat(p["hc1_W1"], CIN_PAD),
        "hc2_W0m": conv_mat(p["hc2_W0"], CIN_PAD),
        "hc2_W1m": conv_mat(p["hc2_W1"], CIN_PAD),
        "conv2_wm": conv_mat(p["conv2_w"], 16),
        "conv2_bm": p["conv2_b"].reshape(32, 1).astype(jnp.float32),
        "fc1_wm": fc1.astype(jnp.bfloat16),
        "fc1_bm": p["fc1_b"].reshape(1, 128).astype(jnp.float32),
        "fc2_wm": fc2,
        "fc2_bm": fc2_b,
    }


# ------------------------------ pure-JAX reference ---------------------------

def reference_forward(p, x, cov):
    """XLA reference mirroring the PyTorch module (f32 throughout)."""
    if cov == 0:
        kern = p["hc1_W0"] + cov * p["hc1_W1"]
    elif cov == 1:
        kern = p["hc2_W0"] + cov * p["hc2_W1"]
    else:
        return x
    dn = ("NCHW", "OIHW", "NCHW")
    h = jax.nn.relu(lax.conv_general_dilated(x, kern, (1, 1), "VALID",
                                             dimension_numbers=dn))
    h = lax.conv_general_dilated(h, p["conv2_w"], (1, 1), "VALID",
                                 dimension_numbers=dn)
    h = jax.nn.relu(h + p["conv2_b"][None, :, None, None])
    h = lax.reduce_window(h, -jnp.inf, lax.max, (1, 1, 2, 2), (1, 1, 2, 2), "VALID")
    flat = h.reshape(1, -1)
    hid = jax.nn.relu(flat @ p["fc1_w"].T + p["fc1_b"])
    return hid @ p["fc2_w"].T + p["fc2_b"]


if __name__ == "__main__":
    key = jax.random.PRNGKey(0)
    params = init_params(key)
    prep = prepare_params(params)
    x = jax.random.normal(jax.random.fold_in(key, 123), (1, 3, H_IN, W_IN), jnp.float32)

    out0 = hybrid_convnet_forward(prep, x, cov=0)
    out1 = hybrid_convnet_forward(prep, x, cov=1)
    jax.block_until_ready((out0, out1))

    assert out0.shape == (1, 2) and out1.shape == (1, 2)
    assert bool(jnp.all(jnp.isfinite(out0))) and bool(jnp.all(jnp.isfinite(out1)))

    # Loose tolerance: the kernel path stores/uses fc1 weights in bf16.
    ref0 = reference_forward(params, x, 0)
    ref1 = reference_forward(params, x, 1)
    assert jnp.allclose(out0, ref0, rtol=5e-2, atol=5e-2), (out0, ref0)
    assert jnp.allclose(out1, ref1, rtol=5e-2, atol=5e-2), (out1, ref1)

    print("KERNEL_OK")
</pallas_src>

<mosaic_0001>
module attributes {stable_mosaic.version = 11 : i64} {
  func.func @_conv_pool_kernel(%arg0: memref<1xf32, #tpu.memory_space<smem>>, %arg1: memref<36x8x36xf32, #tpu.memory_space<vmem>>, %arg2: memref<16x72xf32, #tpu.memory_space<vmem>>, %arg3: memref<16x72xf32, #tpu.memory_space<vmem>>, %arg4: memref<32x144xf32, #tpu.memory_space<vmem>>, %arg5: memref<32x1xf32, #tpu.memory_space<vmem>>, %arg6: memref<16x32x16xf32, #tpu.memory_space<vmem>>, %arg7: memref<34x16x34xf32, #tpu.memory_space<vmem>>) attributes {dimension_semantics = [], scalar_prefetch = 0 : i64, scratch_operands = 1 : i64, tpu.core_type = #tpu.core_type<tc>} {
    %c0 = arith.constant 0 : index
    %0 = memref.load %arg0[%c0] : memref<1xf32, #tpu.memory_space<smem>>
    %c0_0 = arith.constant 0 : index
    %c0_1 = arith.constant 0 : index
    %1 = vector.load %arg2[%c0_0, %c0_1] : memref<16x72xf32, #tpu.memory_space<vmem>>, vector<16x72xf32>
    %c0_2 = arith.constant 0 : index
    %c0_3 = arith.constant 0 : index
    %2 = vector.load %arg3[%c0_2, %c0_3] : memref<16x72xf32, #tpu.memory_space<vmem>>, vector<16x72xf32>
    %3 = vector.broadcast %0 : f32 to vector<16x72xf32>
    %4 = arith.mulf %3, %2 : vector<16x72xf32>
    %5 = arith.addf %1, %4 : vector<16x72xf32>
    %c0_4 = arith.constant 0 : index
    %c0_5 = arith.constant 0 : index
    %6 = vector.load %arg4[%c0_4, %c0_5] : memref<32x144xf32, #tpu.memory_space<vmem>>, vector<32x144xf32>
    %c0_6 = arith.constant 0 : index
    %c0_7 = arith.constant 0 : index
    %7 = vector.load %arg5[%c0_6, %c0_7] : memref<32x1xf32, #tpu.memory_space<vmem>>, vector<32x1xf32>
    %8 = tpu.iota {dimensions = array<i32: 0>} : vector<32x16xi32>
    %9 = tpu.iota {dimensions = array<i32: 1>} : vector<32x16xi32>
    %c2_i32 = arith.constant 2 : i32
    %10 = vector.broadcast %c2_i32 : i32 to vector<32x16xi32>
    %11 = arith.muli %10, %9 : vector<32x16xi32>
    %12 = arith.cmpi eq, %8, %11 : vector<32x16xi32>
    %13 = arith.extui %12 : vector<32x16xi1> to vector<32x16xi32>
    %14 = arith.sitofp %13 : vector<32x16xi32> to vector<32x16xf32>
    %c2_i32_8 = arith.constant 2 : i32
    %15 = vector.broadcast %c2_i32_8 : i32 to vector<32x16xi32>
    %16 = arith.muli %15, %9 : vector<32x16xi32>
    %c1_i32 = arith.constant 1 : i32
    %17 = vector.broadcast %c1_i32 : i32 to vector<32x16xi32>
    %18 = arith.addi %16, %17 : vector<32x16xi32>
    %19 = arith.cmpi eq, %8, %18 : vector<32x16xi32>
    %20 = arith.extui %19 : vector<32x16xi1> to vector<32x16xi32>
    %21 = arith.sitofp %20 : vector<32x16xi32> to vector<32x16xf32>
    %c0_i32 = arith.constant 0 : i32
    %c34_i32 = arith.constant 34 : i32
    %22 = arith.addi %c0_i32, %c34_i32 : i32
    %c1_i32_9 = arith.constant 1 : i32
    scf.for %arg8 = %c0_i32 to %22 step %c1_i32_9  : i32 {
      %c0_i32_14 = arith.constant 0 : i32
      %24 = arith.addi %arg8, %c0_i32_14 : i32
      %25 = arith.index_cast %24 : i32 to index
      %c0_15 = arith.constant 0 : index
      %c0_16 = arith.constant 0 : index
      %26 = vector.load %arg1[%25, %c0_15, %c0_16] : memref<36x8x36xf32, #tpu.memory_space<vmem>>, vector<1x8x34xf32>
      %27 = vector.shape_cast %26 : vector<1x8x34xf32> to vector<8x34xf32>
      %c0_i32_17 = arith.constant 0 : i32
      %28 = arith.addi %arg8, %c0_i32_17 : i32
      %29 = arith.index_cast %28 : i32 to index
      %c0_18 = arith.constant 0 : index
      %c1 = arith.constant 1 : index
      %30 = vector.load %arg1[%29, %c0_18, %c1] : memref<36x8x36xf32, #tpu.memory_space<vmem>>, vector<1x8x34xf32>
      %31 = vector.shape_cast %30 : vector<1x8x34xf32> to vector<8x34xf32>
      %c0_i32_19 = arith.constant 0 : i32
      %32 = arith.addi %arg8, %c0_i32_19 : i32
      %33 = arith.index_cast %32 : i32 to index
      %c0_20 = arith.constant 0 : index
      %c2 = arith.constant 2 : index
      %34 = vector.load %arg1[%33, %c0_20, %c2] : memref<36x8x36xf32, #tpu.memory_space<vmem>>, vector<1x8x34xf32>
      %35 = vector.shape_cast %34 : vector<1x8x34xf32> to vector<8x34xf32>
      %c1_i32_21 = arith.constant 1 : i32
      %36 = arith.addi %arg8, %c1_i32_21 : i32
      %37 = arith.index_cast %36 : i32 to index
      %c0_22 = arith.constant 0 : index
      %c0_23 = arith.constant 0 : index
      %38 = vector.load %arg1[%37, %c0_22, %c0_23] : memref<36x8x36xf32, #tpu.memory_space<vmem>>, vector<1x8x34xf32>
      %39 = vector.shape_cast %38 : vector<1x8x34xf32> to vector<8x34xf32>
      %c1_i32_24 = arith.constant 1 : i32
      %40 = arith.addi %arg8, %c1_i32_24 : i32
      %41 = arith.index_cast %40 : i32 to index
      %c0_25 = arith.constant 0 : index
      %c1_26 = arith.constant 1 : index
      %42 = vector.load %arg1[%41, %c0_25, %c1_26] : memref<36x8x36xf32, #tpu.memory_space<vmem>>, vector<1x8x34xf32>
      %43 = vector.shape_cast %42 : vector<1x8x34xf32> to vector<8x34xf32>
      %c1_i32_27 = arith.constant 1 : i32
      %44 = arith.addi %arg8, %c1_i32_27 : i32
      %45 = arith.index_cast %44 : i32 to index
      %c0_28 = arith.constant 0 : index
      %c2_29 = arith.constant 2 : index
      %46 = vector.load %arg1[%45, %c0_28, %c2_29] : memref<36x8x36xf32, #tpu.memory_space<vmem>>, vector<1x8x34xf32>
      %47 = vector.shape_cast %46 : vector<1x8x34xf32> to vector<8x34xf32>
      %c2_i32_30 = arith.constant 2 : i32
      %48 = arith.addi %arg8, %c2_i32_30 : i32
      %49 = arith.index_cast %48 : i32 to index
      %c0_31 = arith.constant 0 : index
      %c0_32 = arith.constant 0 : index
      %50 = vector.load %arg1[%49, %c0_31, %c0_32] : memref<36x8x36xf32, #tpu.memory_space<vmem>>, vector<1x8x34xf32>
      %51 = vector.shape_cast %50 : vector<1x8x34xf32> to vector<8x34xf32>
      %c2_i32_33 = arith.constant 2 : i32
      %52 = arith.addi %arg8, %c2_i32_33 : i32
      %53 = arith.index_cast %52 : i32 to index
      %c0_34 = arith.constant 0 : index
      %c1_35 = arith.constant 1 : index
      %54 = vector.load %arg1[%53, %c0_34, %c1_35] : memref<36x8x36xf32, #tpu.memory_space<vmem>>, vector<1x8x34xf32>
      %55 = vector.shape_cast %54 : vector<1x8x34xf32> to vector<8x34xf32>
      %c2_i32_36 = arith.constant 2 : i32
      %56 = arith.addi %arg8, %c2_i32_36 : i32
      %57 = arith.index_cast %56 : i32 to index
      %c0_37 = arith.constant 0 : index
      %c2_38 = arith.constant 2 : index
      %58 = vector.load %arg1[%57, %c0_37, %c2_38] : memref<36x8x36xf32, #tpu.memory_space<vmem>>, vector<1x8x34xf32>
      %59 = vector.shape_cast %58 : vector<1x8x34xf32> to vector<8x34xf32>
      %60 = tpu.concatenate %27, %31, %35, %39, %43, %47, %51, %55, %59 in 0 : vector<8x34xf32>, vector<8x34xf32>, vector<8x34xf32>, vector<8x34xf32>, vector<8x34xf32>, vector<8x34xf32>, vector<8x34xf32>, vector<8x34xf32>, vector<8x34xf32> -> vector<72x34xf32>
      %cst = arith.constant dense<0.000000e+00> : vector<16x34xf32>
      %61 = tpu.matmul %5, %60, %cst {dimension_numbers = #tpu.dot_dimension_numbers<[1], [0], [0], [1], [0, 0, 1, 1], [], []>} : vector<16x72xf32>, vector<72x34xf32>, vector<16x34xf32> -> vector<16x34xf32>
      %cst_39 = arith.constant 0.000000e+00 : f32
      %62 = vector.broadcast %cst_39 : f32 to vector<16x34xf32>
      %63 = arith.maximumf %61, %62 : vector<16x34xf32>
      %64 = arith.index_cast %arg8 : i32 to index
      %c0_40 = arith.constant 0 : index
      %c0_41 = arith.constant 0 : index
      %65 = vector.load %arg7[%64, %c0_40, %c0_41] : memref<34x16x34xf32, #tpu.memory_space<vmem>>, vector<1x16x34xf32>
      %66 = vector.shape_cast %65 : vector<1x16x34xf32> to vector<16x34xf32>
      %67 = vector.shape_cast %63 : vector<16x34xf32> to vector<1x16x34xf32>
      tpu.vector_store %arg7[%64, %c0_40, %c0_41], %67 {strides = array<i32>} : memref<34x16x34xf32, #tpu.memory_space<vmem>>, vector<1x16x34xf32>,
    }
    %c34_i32_10 = arith.constant 34 : i32
    %c0_i32_11 = arith.constant 0 : i32
    %c16_i32 = arith.constant 16 : i32
    %23 = arith.addi %c0_i32_11, %c16_i32 : i32
    %c1_i32_12 = arith.constant 1 : i32
    scf.for %arg8 = %c0_i32_11 to %23 step %c1_i32_12  : i32 {
      %c2_i32_14 = arith.constant 2 : i32
      %24 = arith.muli %c2_i32_14, %arg8 : i32
      %c0_i32_15 = arith.constant 0 : i32
      %25 = arith.addi %24, %c0_i32_15 : i32
      %26 = arith.index_cast %25 : i32 to index
      %c0_16 = arith.constant 0 : index
      %c0_17 = arith.constant 0 : index
      %27 = vector.load %arg7[%26, %c0_16, %c0_17] : memref<34x16x34xf32, #tpu.memory_space<vmem>>, vector<1x16x32xf32>
      %28 = vector.shape_cast %27 : vector<1x16x32xf32> to vector<16x32xf32>
      %c0_i32_18 = arith.constant 0 : i32
      %29 = arith.addi %24, %c0_i32_18 : i32
      %30 = arith.index_cast %29 : i32 to index
      %c0_19 = arith.constant 0 : index
      %c1 = arith.constant 1 : index
      %31 = vector.load %arg7[%30, %c0_19, %c1] : memref<34x16x34xf32, #tpu.memory_space<vmem>>, vector<1x16x32xf32>
      %32 = vector.shape_cast %31 : vector<1x16x32xf32> to vector<16x32xf32>
      %c0_i32_20 = arith.constant 0 : i32
      %33 = arith.addi %24, %c0_i32_20 : i32
      %34 = arith.index_cast %33 : i32 to index
      %c0_21 = arith.constant 0 : index
      %c2 = arith.constant 2 : index
      %35 = vector.load %arg7[%34, %c0_21, %c2] : memref<34x16x34xf32, #tpu.memory_space<vmem>>, vector<1x16x32xf32>
      %36 = vector.shape_cast %35 : vector<1x16x32xf32> to vector<16x32xf32>
      %c1_i32_22 = arith.constant 1 : i32
      %37 = arith.addi %24, %c1_i32_22 : i32
      %38 = arith.index_cast %37 : i32 to index
      %c0_23 = arith.constant 0 : index
      %c0_24 = arith.constant 0 : index
      %39 = vector.load %arg7[%38, %c0_23, %c0_24] : memref<34x16x34xf32, #tpu.memory_space<vmem>>, vector<1x16x32xf32>
      %40 = vector.shape_cast %39 : vector<1x16x32xf32> to vector<16x32xf32>
      %c1_i32_25 = arith.constant 1 : i32
      %41 = arith.addi %24, %c1_i32_25 : i32
      %42 = arith.index_cast %41 : i32 to index
      %c0_26 = arith.constant 0 : index
      %c1_27 = arith.constant 1 : index
      %43 = vector.load %arg7[%42, %c0_26, %c1_27] : memref<34x16x34xf32, #tpu.memory_space<vmem>>, vector<1x16x32xf32>
      %44 = vector.shape_cast %43 : vector<1x16x32xf32> to vector<16x32xf32>
      %c1_i32_28 = arith.constant 1 : i32
      %45 = arith.addi %24, %c1_i32_28 : i32
      %46 = arith.index_cast %45 : i32 to index
      %c0_29 = arith.constant 0 : index
      %c2_30 = arith.constant 2 : index
      %47 = vector.load %arg7[%46, %c0_29, %c2_30] : memref<34x16x34xf32, #tpu.memory_space<vmem>>, vector<1x16x32xf32>
      %48 = vector.shape_cast %47 : vector<1x16x32xf32> to vector<16x32xf32>
      %c2_i32_31 = arith.constant 2 : i32
      %49 = arith.addi %24, %c2_i32_31 : i32
      %50 = arith.index_cast %49 : i32 to index
      %c0_32 = arith.constant 0 : index
      %c0_33 = arith.constant 0 : index
      %51 = vector.load %arg7[%50, %c0_32, %c0_33] : memref<34x16x34xf32, #tpu.memory_space<vmem>>, vector<1x16x32xf32>
      %52 = vector.shape_cast %51 : vector<1x16x32xf32> to vector<16x32xf32>
      %c2_i32_34 = arith.constant 2 : i32
      %53 = arith.addi %24, %c2_i32_34 : i32
      %54 = arith.index_cast %53 : i32 to index
      %c0_35 = arith.constant 0 : index
      %c1_36 = arith.constant 1 : index
      %55 = vector.load %arg7[%54, %c0_35, %c1_36] : memref<34x16x34xf32, #tpu.memory_space<vmem>>, vector<1x16x32xf32>
      %56 = vector.shape_cast %55 : vector<1x16x32xf32> to vector<16x32xf32>
      %c2_i32_37 = arith.constant 2 : i32
      %57 = arith.addi %24, %c2_i32_37 : i32
      %58 = arith.index_cast %57 : i32 to index
      %c0_38 = arith.constant 0 : index
      %c2_39 = arith.constant 2 : index
      %59 = vector.load %arg7[%58, %c0_38, %c2_39] : memref<34x16x34xf32, #tpu.memory_space<vmem>>, vector<1x16x32xf32>
      %60 = vector.shape_cast %59 : vector<1x16x32xf32> to vector<16x32xf32>
      %61 = tpu.concatenate %28, %32, %36, %40, %44, %48, %52, %56, %60 in 0 : vector<16x32xf32>, vector<16x32xf32>, vector<16x32xf32>, vector<16x32xf32>, vector<16x32xf32>, vector<16x32xf32>, vector<16x32xf32>, vector<16x32xf32>, vector<16x32xf32> -> vector<144x32xf32>
      %cst = arith.constant dense<0.000000e+00> : vector<32x32xf32>
      %62 = tpu.matmul %6, %61, %cst {dimension_numbers = #tpu.dot_dimension_numbers<[1], [0], [0], [1], [0, 0, 1, 1], [], []>} : vector<32x144xf32>, vector<144x32xf32>, vector<32x32xf32> -> vector<32x32xf32>
      %63 = vector.broadcast %7 : vector<32x1xf32> to vector<32x32xf32>
      %64 = arith.addf %62, %63 : vector<32x32xf32>
      %cst_40 = arith.constant 0.000000e+00 : f32
      %65 = vector.broadcast %cst_40 : f32 to vector<32x32xf32>
      %66 = arith.maximumf %64, %65 : vector<32x32xf32>
      %c1_i32_41 = arith.constant 1 : i32
      %67 = arith.addi %24, %c1_i32_41 : i32
      %c0_i32_42 = arith.constant 0 : i32
      %68 = arith.addi %67, %c0_i32_42 : i32
      %69 = arith.index_cast %68 : i32 to index
      %c0_43 = arith.constant 0 : index
      %c0_44 = arith.constant 0 : index
      %70 = vector.load %arg7[%69, %c0_43, %c0_44] : memref<34x16x34xf32, #tpu.memory_space<vmem>>, vector<1x16x32xf32>
      %71 = vector.shape_cast %70 : vector<1x16x32xf32> to vector<16x32xf32>
      %c0_i32_45 = arith.constant 0 : i32
      %72 = arith.addi %67, %c0_i32_45 : i32
      %73 = arith.index_cast %72 : i32 to index
      %c0_46 = arith.constant 0 : index
      %c1_47 = arith.constant 1 : index
      %74 = vector.load %arg7[%73, %c0_46, %c1_47] : memref<34x16x34xf32, #tpu.memory_space<vmem>>, vector<1x16x32xf32>
      %75 = vector.shape_cast %74 : vector<1x16x32xf32> to vector<16x32xf32>
      %c0_i32_48 = arith.constant 0 : i32
      %76 = arith.addi %67, %c0_i32_48 : i32
      %77 = arith.index_cast %76 : i32 to index
      %c0_49 = arith.constant 0 : index
      %c2_50 = arith.constant 2 : index
      %78 = vector.load %arg7[%77, %c0_49, %c2_50] : memref<34x16x34xf32, #tpu.memory_space<vmem>>, vector<1x16x32xf32>
      %79 = vector.shape_cast %78 : vector<1x16x32xf32> to vector<16x32xf32>
      %c1_i32_51 = arith.constant 1 : i32
      %80 = arith.addi %67, %c1_i32_51 : i32
      %81 = arith.index_cast %80 : i32 to index
      %c0_52 = arith.constant 0 : index
      %c0_53 = arith.constant 0 : index
      %82 = vector.load %arg7[%81, %c0_52, %c0_53] : memref<34x16x34xf32, #tpu.memory_space<vmem>>, vector<1x16x32xf32>
      %83 = vector.shape_cast %82 : vector<1x16x32xf32> to vector<16x32xf32>
      %c1_i32_54 = arith.constant 1 : i32
      %84 = arith.addi %67, %c1_i32_54 : i32
      %85 = arith.index_cast %84 : i32 to index
      %c0_55 = arith.constant 0 : index
      %c1_56 = arith.constant 1 : index
      %86 = vector.load %arg7[%85, %c0_55, %c1_56] : memref<34x16x34xf32, #tpu.memory_space<vmem>>, vector<1x16x32xf32>
      %87 = vector.shape_cast %86 : vector<1x16x32xf32> to vector<16x32xf32>
      %c1_i32_57 = arith.constant 1 : i32
      %88 = arith.addi %67, %c1_i32_57 : i32
      %89 = arith.index_cast %88 : i32 to index
      %c0_58 = arith.constant 0 : index
      %c2_59 = arith.constant 2 : index
      %90 = vector.load %arg7[%89, %c0_58, %c2_59] : memref<34x16x34xf32, #tpu.memory_space<vmem>>, vector<1x16x32xf32>
      %91 = vector.shape_cast %90 : vector<1x16x32xf32> to vector<16x32xf32>
      %c2_i32_60 = arith.constant 2 : i32
      %92 = arith.addi %67, %c2_i32_60 : i32
      %93 = arith.index_cast %92 : i32 to index
      %c0_61 = arith.constant 0 : index
      %c0_62 = arith.constant 0 : index
      %94 = vector.load %arg7[%93, %c0_61, %c0_62] : memref<34x16x34xf32, #tpu.memory_space<vmem>>, vector<1x16x32xf32>
      %95 = vector.shape_cast %94 : vector<1x16x32xf32> to vector<16x32xf32>
      %c2_i32_63 = arith.constant 2 : i32
      %96 = arith.addi %67, %c2_i32_63 : i32
      %97 = arith.index_cast %96 : i32 to index
      %c0_64 = arith.constant 0 : index
      %c1_65 = arith.constant 1 : index
      %98 = vector.load %arg7[%97, %c0_64, %c1_65] : memref<34x16x34xf32, #tpu.memory_space<vmem>>, vector<1x16x32xf32>
      %99 = vector.shape_cast %98 : vector<1x16x32xf32> to vector<16x32xf32>
      %c2_i32_66 = arith.constant 2 : i32
      %100 = arith.addi %67, %c2_i32_66 : i32
      %101 = arith.index_cast %100 : i32 to index
      %c0_67 = arith.constant 0 : index
      %c2_68 = arith.constant 2 : index
      %102 = vector.load %arg7[%101, %c0_67, %c2_68] : memref<34x16x34xf32, #tpu.memory_space<vmem>>, vector<1x16x32xf32>
      %103 = vector.shape_cast %102 : vector<1x16x32xf32> to vector<16x32xf32>
      %104 = tpu.concatenate %71, %75, %79, %83, %87, %91, %95, %99, %103 in 0 : vector<16x32xf32>, vector<16x32xf32>, vector<16x32xf32>, vector<16x32xf32>, vector<16x32xf32>, vector<16x32xf32>, vector<16x32xf32>, vector<16x32xf32>, vector<16x32xf32> -> vector<144x32xf32>
      %cst_69 = arith.constant dense<0.000000e+00> : vector<32x32xf32>
      %105 = tpu.matmul %6, %104, %cst_69 {dimension_numbers = #tpu.dot_dimension_numbers<[1], [0], [0], [1], [0, 0, 1, 1], [], []>} : vector<32x144xf32>, vector<144x32xf32>, vector<32x32xf32> -> vector<32x32xf32>
      %106 = vector.broadcast %7 : vector<32x1xf32> to vector<32x32xf32>
      %107 = arith.addf %105, %106 : vector<32x32xf32>
      %cst_70 = arith.constant 0.000000e+00 : f32
      %108 = vector.broadcast %cst_70 : f32 to vector<32x32xf32>
      %109 = arith.maximumf %107, %108 : vector<32x32xf32>
      %110 = arith.maximumf %66, %109 : vector<32x32xf32>
      %cst_71 = arith.constant dense<0.000000e+00> : vector<32x16xf32>
      %111 = tpu.matmul %110, %14, %cst_71 {dimension_numbers = #tpu.dot_dimension_numbers<[1], [0], [0], [1], [0, 0, 1, 1], [], []>} : vector<32x32xf32>, vector<32x16xf32>, vector<32x16xf32> -> vector<32x16xf32>
      %cst_72 = arith.constant dense<0.000000e+00> : vector<32x16xf32>
      %112 = tpu.matmul %110, %21, %cst_72 {dimension_numbers = #tpu.dot_dimension_numbers<[1], [0], [0], [1], [0, 0, 1, 1], [], []>} : vector<32x32xf32>, vector<32x16xf32>, vector<32x16xf32> -> vector<32x16xf32>
      %113 = arith.maximumf %111, %112 : vector<32x16xf32>
      %114 = arith.index_cast %arg8 : i32 to index
      %c0_73 = arith.constant 0 : index
      %c0_74 = arith.constant 0 : index
      %115 = vector.load %arg6[%114, %c0_73, %c0_74] : memref<16x32x16xf32, #tpu.memory_space<vmem>>, vector<1x32x16xf32>
      %116 = vector.shape_cast %115 : vector<1x32x16xf32> to vector<32x16xf32>
      %117 = vector.shape_cast %113 : vector<32x16xf32> to vector<1x32x16xf32>
      tpu.vector_store %arg6[%114, %c0_73, %c0_74], %117 {strides = array<i32>} : memref<16x32x16xf32, #tpu.memory_space<vmem>>, vector<1x32x16xf32>,
    }
    %c16_i32_13 = arith.constant 16 : i32
    return
  }
}

module attributes {stable_mosaic.version = 11 : i64} {
  func.func @_fc_kernel(%arg0: i32, %arg1: memref<1x2048xf32, #tpu.memory_space<vmem>>, %arg2: memref<2048x128xbf16, #tpu.memory_space<vmem>>, %arg3: memref<1x128xf32, #tpu.memory_space<vmem>>, %arg4: memref<128x128xf32, #tpu.memory_space<vmem>>, %arg5: memref<1x128xf32, #tpu.memory_space<vmem>>, %arg6: memref<1x128xf32, #tpu.memory_space<vmem>>, %arg7: memref<1x128xf32, #tpu.memory_space<vmem>>) attributes {dimension_semantics = [#tpu.dimension_semantics<arbitrary>], iteration_bounds = array<i64: 4>, scalar_prefetch = 0 : i64, scratch_operands = 1 : i64, tpu.core_type = #tpu.core_type<tc>, window_params = [{transform_indices = @transform_0, window_bounds = array<i64: 1, 2048>}, {transform_indices = @transform_1, window_bounds = array<i64: 2048, 128>}, {pipeline_mode = #tpu.pipeline_mode<synchronous>, transform_indices = @transform_2, window_bounds = array<i64: 1, 128>}, {pipeline_mode = #tpu.pipeline_mode<synchronous>, transform_indices = @transform_3, window_bounds = array<i64: 128, 128>}, {pipeline_mode = #tpu.pipeline_mode<synchronous>, transform_indices = @transform_4, window_bounds = array<i64: 1, 128>}, {pipeline_mode = #tpu.pipeline_mode<synchronous>, transform_indices = @transform_5, window_bounds = array<i64: 1, 128>}]} {
    %c0_i32 = arith.constant 0 : i32
    %0 = arith.cmpi eq, %arg0, %c0_i32 : i32
    %1 = arith.extui %0 : i1 to i32
    %c0_i32_0 = arith.constant 0 : i32
    %2 = arith.cmpi ne, %1, %c0_i32_0 : i32
    scf.if %2 {
      %cst_9 = arith.constant 0.000000e+00 : f32
      %13 = vector.broadcast %cst_9 : f32 to vector<1x128xf32>
      %c0_10 = arith.constant 0 : index
      %c0_11 = arith.constant 0 : index
      %14 = vector.load %arg7[%c0_10, %c0_11] : memref<1x128xf32, #tpu.memory_space<vmem>>, vector<1x128xf32>
      tpu.vector_store %arg7[%c0_10, %c0_11], %13 {strides = array<i32>} : memref<1x128xf32, #tpu.memory_space<vmem>>, vector<1x128xf32>,
    } else {
    }
    %c0 = arith.constant 0 : index
    %c0_1 = arith.constant 0 : index
    %3 = vector.load %arg1[%c0, %c0_1] : memref<1x2048xf32, #tpu.memory_space<vmem>>, vector<1x2048xf32>
    %4 = arith.truncf %3 : vector<1x2048xf32> to vector<1x2048xbf16>
    %c0_2 = arith.constant 0 : index
    %c0_3 = arith.constant 0 : index
    %5 = vector.load %arg7[%c0_2, %c0_3] : memref<1x128xf32, #tpu.memory_space<vmem>>, vector<1x128xf32>
    %c0_4 = arith.constant 0 : index
    %c0_5 = arith.constant 0 : index
    %6 = vector.load %arg2[%c0_4, %c0_5] : memref<2048x128xbf16, #tpu.memory_space<vmem>>, vector<2048x128xbf16>
    %cst = arith.constant dense<0.000000e+00> : vector<1x128xf32>
    %7 = tpu.matmul %4, %6, %cst {dimension_numbers = #tpu.dot_dimension_numbers<[1], [0], [0], [1], [0, 0, 1, 1], [], []>} : vector<1x2048xbf16>, vector<2048x128xbf16>, vector<1x128xf32> -> vector<1x128xf32>
    %8 = arith.addf %5, %7 : vector<1x128xf32>
    %c0_6 = arith.constant 0 : index
    %c0_7 = arith.constant 0 : index
    %9 = vector.load %arg7[%c0_6, %c0_7] : memref<1x128xf32, #tpu.memory_space<vmem>>, vector<1x128xf32>
    tpu.vector_store %arg7[%c0_6, %c0_7], %8 {strides = array<i32>} : memref<1x128xf32, #tpu.memory_space<vmem>>, vector<1x128xf32>,
    %c3_i32 = arith.constant 3 : i32
    %10 = arith.cmpi eq, %arg0, %c3_i32 : i32
    %11 = arith.extui %10 : i1 to i32
    %c0_i32_8 = arith.constant 0 : i32
    %12 = arith.cmpi ne, %11, %c0_i32_8 : i32
    scf.if %12 {
      %c0_9 = arith.constant 0 : index
      %c0_10 = arith.constant 0 : index
      %13 = vector.load %arg7[%c0_9, %c0_10] : memref<1x128xf32, #tpu.memory_space<vmem>>, vector<1x128xf32>
      %c0_11 = arith.constant 0 : index
      %c0_12 = arith.constant 0 : index
      %14 = vector.load %arg3[%c0_11, %c0_12] : memref<1x128xf32, #tpu.memory_space<vmem>>, vector<1x128xf32>
      %15 = arith.addf %13, %14 : vector<1x128xf32>
      %cst_13 = arith.constant 0.000000e+00 : f32
      %16 = vector.broadcast %cst_13 : f32 to vector<1x128xf32>
      %17 = arith.maximumf %15, %16 : vector<1x128xf32>
      %c0_14 = arith.constant 0 : index
      %c0_15 = arith.constant 0 : index
      %18 = vector.load %arg4[%c0_14, %c0_15] : memref<128x128xf32, #tpu.memory_space<vmem>>, vector<128x128xf32>
      %cst_16 = arith.constant dense<0.000000e+00> : vector<1x128xf32>
      %19 = tpu.matmul %17, %18, %cst_16 {dimension_numbers = #tpu.dot_dimension_numbers<[1], [0], [0], [1], [0, 0, 1, 1], [], []>} : vector<1x128xf32>, vector<128x128xf32>, vector<1x128xf32> -> vector<1x128xf32>
      %c0_17 = arith.constant 0 : index
      %c0_18 = arith.constant 0 : index
      %20 = vector.load %arg5[%c0_17, %c0_18] : memref<1x128xf32, #tpu.memory_space<vmem>>, vector<1x128xf32>
      %21 = arith.addf %19, %20 : vector<1x128xf32>
      %c0_19 = arith.constant 0 : index
      %c0_20 = arith.constant 0 : index
      %22 = vector.load %arg6[%c0_19, %c0_20] : memref<1x128xf32, #tpu.memory_space<vmem>>, vector<1x128xf32>
      tpu.vector_store %arg6[%c0_19, %c0_20], %21 {strides = array<i32>} : memref<1x128xf32, #tpu.memory_space<vmem>>, vector<1x128xf32>,
    } else {
    }
    return
  }
  func.func @transform_0(%arg0: i32) -> (i32, i32) {
    %c0_i32 = arith.constant 0 : i32
    %c0_i32_0 = arith.constant 0 : i32
    return %c0_i32, %arg0 : i32, i32
  }
  func.func @transform_1(%arg0: i32) -> (i32, i32) {
    %c0_i32 = arith.constant 0 : i32
    %c0_i32_0 = arith.constant 0 : i32
    return %arg0, %c0_i32 : i32, i32
  }
  func.func @transform_2(%arg0: i32) -> (i32, i32) {
    %c0_i32 = arith.constant 0 : i32
    %c0_i32_0 = arith.constant 0 : i32
    %c0_i32_1 = arith.constant 0 : i32
    return %c0_i32, %c0_i32_0 : i32, i32
  }
  func.func @transform_3(%arg0: i32) -> (i32, i32) {
    %c0_i32 = arith.constant 0 : i32
    %c0_i32_0 = arith.constant 0 : i32
    %c0_i32_1 = arith.constant 0 : i32
    return %c0_i32, %c0_i32_0 : i32, i32
  }
  func.func @transform_4(%arg0: i32) -> (i32, i32) {
    %c0_i32 = arith.constant 0 : i32
    %c0_i32_0 = arith.constant 0 : i32
    %c0_i32_1 = arith.constant 0 : i32
    return %c0_i32, %c0_i32_0 : i32, i32
  }
  func.func @transform_5(%arg0: i32) -> (i32, i32) {
    %c0_i32 = arith.constant 0 : i32
    %c0_i32_0 = arith.constant 0 : i32
    %c0_i32_1 = arith.constant 0 : i32
    return %c0_i32, %c0_i32_0 : i32, i32
  }
}

</mosaic_0001>

<llo_original>
// kernel: hybrid_convnet_forward.2
$region0: #{hybrid_convnet_forward.2}
  #allocation0 [shape = 'u32[]', space=smem, size = 0x4, offset = 0x4, fixed_abs, tag = 'smem constant byte address 0x4 - core index']
  #allocation1 [shape = 'u32[144,128]{1,0:T(1,128)}', space=vmem, size = 0x12000, scoped, tag = 'internal scratch']
  #allocation2 [shape = 'f32[34,16,34]{2,1,0:T(8,128)}', space=vmem, size = 0x44000, scoped, tag = 'scratch operand']
  #allocation3 [shape = 'f32[1]{0:T(128)S(6)}', space=smem, size = 0x200, scoped, tag = 'scoped memory for hybrid_convnet_forward.2']
  %s0 = inlined_call_operand.<no memory space> [shape: f32[1], index: 0, kind: input, shape index: {}]
  %s1 = inlined_call_operand.vmem [shape: f32[36,8,36], index: 1, kind: input, shape index: {}]
  %s2 = inlined_call_operand.hbm [shape: f32[16,72], index: 2, kind: input, shape index: {}]
  %s3 = inlined_call_operand.hbm [shape: f32[16,72], index: 3, kind: input, shape index: {}]
  %s4 = inlined_call_operand.hbm [shape: f32[32,144], index: 4, kind: input, shape index: {}]
  %s5 = inlined_call_operand.vmem [shape: f32[32,1], index: 5, kind: input, shape index: {}]
  %s6 = inlined_call_operand.vmem [shape: f32[16,32,16], index: 6, kind: output, shape index: {}]
  %s7 = sld [smem:[#allocation0]]
  $region60: #{hybrid_convnet_forward.2} parent=0
    _
  %s9 = ssub.s32 1, %s7
  %s10 = scalar_select 0, %s9, %s7
  %11 = sst [smem:[#allocation3]] %s0
  $region1: #{hybrid_convnet_forward.2} parent=0
    #allocation4 [shape = 'u8[8192]{0}', space=vmem, size = 0x2000, scoped, tag = 'input window, operand 2, single buffered']
    #allocation5 [shape = 's32[1]{0}', space=sflag, size = 0x4, scoped, tag = 'scoped memory for hybrid_convnet_forward.2']
    #allocation6 [shape = 'u8[8192]{0}', space=vmem, size = 0x2000, scoped, tag = 'input window, operand 3, single buffered']
    #allocation7 [shape = 's32[1]{0}', space=sflag, size = 0x4, scoped, tag = 'scoped memory for hybrid_convnet_forward.2']
    #allocation8 [shape = 'u8[32768]{0}', space=vmem, size = 0x8000, scoped, tag = 'input window, operand 4, single buffered']
    %12 = vsyncpa [#allocation5], 0
    %13 = vsyncpa [#allocation7], 0
    // Predicated region
    $region2: #{hybrid_convnet_forward.2} parent=1 // pred_check
      _
    $region3: #{hybrid_convnet_forward.2} parent=1 // pred_check_branch
      %15 = sbr.rel (0) target = $region5
    $region4: #{hybrid_convnet_forward.2} parent=1 // pred_region
      _
    $region5: #{hybrid_convnet_forward.2} parent=1 // pred_fallthru
      _
    // Predicated region
    $region6: #{hybrid_convnet_forward.2} parent=1 // pred_check
      _
    $region7: #{hybrid_convnet_forward.2} parent=1 // pred_check_branch
      %17 = sbr.rel (0) target = $region9
    $region8: #{hybrid_convnet_forward.2} parent=1 // pred_region
      _
    $region9: #{hybrid_convnet_forward.2} parent=1 // pred_fallthru
      _
    // Predicated region
    $region10: #{hybrid_convnet_forward.2} parent=1 // pred_check
      _
    $region11: #{hybrid_convnet_forward.2} parent=1 // pred_check_branch
      %19 = sbr.rel (0) target = $region13
    $region12: #{hybrid_convnet_forward.2} parent=1 // pred_region
      %s21 = ssub.s32 256, 256
      %22 = vsyncadd [#allocation5], %s21
      %s23 = sshll.u32 [#allocation4], 4
      %s24 = int_to_ptr.vmem [resolvable:$true] %s23
      %29 = dma.hbm_to_vmem [thread:$0]  %s2, 256, %s24, [#allocation5], 128, 128, 8
    $region13: #{hybrid_convnet_forward.2} parent=1 // pred_fallthru
      _
    // Predicated region
    $region14: #{hybrid_convnet_forward.2} parent=1 // pred_check
      _
    $region15: #{hybrid_convnet_forward.2} parent=1 // pred_check_branch
      %31 = sbr.rel (0) target = $region17
    $region16: #{hybrid_convnet_forward.2} parent=1 // pred_region
      %s33 = ssub.s32 256, 256
      %34 = vsyncadd [#allocation7], %s33
      %s35 = sshll.u32 [#allocation6], 4
      %s36 = int_to_ptr.vmem [resolvable:$true] %s35
      %41 = dma.hbm_to_vmem [thread:$0]  %s3, 256, %s36, [#allocation7], 128, 128, 8
    $region17: #{hybrid_convnet_forward.2} parent=1 // pred_fallthru
      _
    // Predicated region
    $region18: #{hybrid_convnet_forward.2} parent=1 // pred_check
      _
    $region19: #{hybrid_convnet_forward.2} parent=1 // pred_check_branch
      %43 = sbr.rel (0) target = $region21
    $region20: #{hybrid_convnet_forward.2} parent=1 // pred_region
      %s45 = ssub.s32 1024, 1024
      %46 = vsyncadd [#allocation7], %s45
      %s47 = sshll.u32 [#allocation8], 4
      %s48 = int_to_ptr.vmem [resolvable:$true] %s47
      %53 = dma.hbm_to_vmem [thread:$0]  %s4, 1024, %s48, [#allocation7], 256, 256, 16
    $region21: #{hybrid_convnet_forward.2} parent=1 // pred_fallthru
      _
    // Predicated region
    $region22: #{hybrid_convnet_forward.2} parent=1 // pred_check
      _
    $region23: #{hybrid_convnet_forward.2} parent=1 // pred_check_branch
      %55 = sbr.rel (0) target = $region25
    $region24: #{hybrid_convnet_forward.2} parent=1 // pred_region
      _
    $region25: #{hybrid_convnet_forward.2} parent=1 // pred_fallthru
      _
    // Predicated region
    $region26: #{hybrid_convnet_forward.2} parent=1 // pred_check
      _
    $region27: #{hybrid_convnet_forward.2} parent=1 // pred_check_branch
      %57 = sbr.rel (0) target = $region29
    $region28: #{hybrid_convnet_forward.2} parent=1 // pred_region
      %58 = dma.done [#allocation5], 256
    $region29: #{hybrid_convnet_forward.2} parent=1 // pred_fallthru
      _
    // Predicated region
    $region30: #{hybrid_convnet_forward.2} parent=1 // pred_check
      _
    $region31: #{hybrid_convnet_forward.2} parent=1 // pred_check_branch
      %60 = sbr.rel (0) target = $region33
    $region32: #{hybrid_convnet_forward.2} parent=1 // pred_region
      %61 = dma.done [#allocation7], 256
    $region33: #{hybrid_convnet_forward.2} parent=1 // pred_fallthru
      _
    // Predicated region
    $region34: #{hybrid_convnet_forward.2} parent=1 // pred_check
      _
    $region35: #{hybrid_convnet_forward.2} parent=1 // pred_check_branch
      %63 = sbr.rel (0) target = $region37
    $region36: #{hybrid_convnet_forward.2} parent=1 // pred_region
      %64 = dma.done [#allocation7], 1024
    $region37: #{hybrid_convnet_forward.2} parent=1 // pred_fallthru
      _
    %s65 = sld [smem:[#allocation3]]
    %v66 = vld [vmem:[#allocation4] sm:$0xff]
    %v67 = vld [vmem:[#allocation4 + $0x8] sm:$0xff]
    %v68 = vld [vmem:[#allocation6] sm:$0xff]
    %v69 = vld [vmem:[#allocation6 + $0x8] sm:$0xff]
    %v70 = vstv %s65
    %v71 = vmul.f32 %v70, %v68
    %v72 = vmul.f32 %v70, %v69
    %v73 = vadd.f32 %v66, %v71
    %v74 = vadd.f32 %v67, %v72
    %v75 = vld [vmem:[#allocation8] sm:$0xff]
    %v76 = vld [vmem:[#allocation8 + $0x8] sm:$0xff]
    %v77 = vld [vmem:[#allocation8 + $0x10] sm:$0xff]
    %v78 = vld [vmem:[#allocation8 + $0x18] sm:$0xff]
    %v79 = vld [vmem:[#allocation8 + $0x20] sm:$0xff]
    %v80 = vld [vmem:[#allocation8 + $0x28] sm:$0xff]
    %v81 = vld [vmem:[#allocation8 + $0x30] sm:$0xff]
    %v82 = vld [vmem:[#allocation8 + $0x38] sm:$0xff]
    %v83 = vld [vmem:[%s5] sm:$0xff]
    %v84 = vld [vmem:[%s5 + $0x8] sm:$0xff]
    %v85 = vld [vmem:[%s5 + $0x10] sm:$0xff]
    %v86 = vld [vmem:[%s5 + $0x18] sm:$0xff]
    %v87 = vlaneseq
    %v88 = vshrl.u32 %v87, 7
    %v89 = vadd.s32 %v88, 8
    %v90 = vadd.s32 %v88, 16
    %v91 = vadd.s32 %v88, 24
    %v92 = vlaneseq
    %v93 = vand.u32 %v92, 127
    %v94 = vmul.u32 %v93, 2
    %vm95 = vcmp.eq.s32.totalorder %v88, %v94
    %vm96 = vcmp.eq.s32.totalorder %v89, %v94
    %vm97 = vcmp.eq.s32.totalorder %v90, %v94
    %vm98 = vcmp.eq.s32.totalorder %v91, %v94
    %v99 = vsel %vm95, 1, 0
    %v100 = vsel %vm96, 1, 0
    %v101 = vsel %vm97, 1, 0
    %v102 = vsel %vm98, 1, 0
    %v103 = vcvt.s32.f32 %v99
    %v104 = vcvt.s32.f32 %v100
    %v105 = vcvt.s32.f32 %v101
    %v106 = vcvt.s32.f32 %v102
    %v107 = vadd.s32 %v94, 1
    %vm108 = vcmp.eq.s32.totalorder %v88, %v107
    %vm109 = vcmp.eq.s32.totalorder %v89, %v107
    %vm110 = vcmp.eq.s32.totalorder %v90, %v107
    %vm111 = vcmp.eq.s32.totalorder %v91, %v107
    %v112 = vsel %vm108, 1, 0
    %v113 = vsel %vm109, 1, 0
    %v114 = vsel %vm110, 1, 0
    %v115 = vsel %vm111, 1, 0
    %v116 = vcvt.s32.f32 %v112
    %v117 = vcvt.s32.f32 %v113
    %v118 = vcvt.s32.f32 %v114
    %v119 = vcvt.s32.f32 %v115
    loop: start=0, step=1, limit=34
    $region38: #{hybrid_convnet_forward.2} parent=1 // loop_pre_header
      _
    $region39: #{hybrid_convnet_forward.2} parent=1 // loop_header
      %s121 = sphi 0, %s125
      %p122 = scmp.ge.s32.totalorder %s121, 34
    $region40: #{hybrid_convnet_forward.2} parent=1 // loop_header_branch
      %124 = sbr.rel (%p122) target = $region44
    $region41: #{hybrid_convnet_forward.2} parent=1 // loop_body
      %s126 = smul.u32 %s121, 8
      %s127 = scalar_lea.vmem %s1, %s126
      %v128 = vld [vmem:[%s127] sm:$0xff]
      %s129 = sadd.s32 %s121, 1
      %s130 = smul.u32 %s129, 8
      %s131 = scalar_lea.vmem %s1, %s130
      %v132 = vld [vmem:[%s131] sm:$0xff]
      %s133 = sadd.s32 %s121, 2
      %s134 = smul.u32 %s133, 8
      %s135 = scalar_lea.vmem %s1, %s134
      %v136 = vld [vmem:[%s135] sm:$0xff]
      %138 = vrot.lane.b32.xlu0 %v128, 127
      %v139 = vpop.permute.xlu0 %138
      %141 = vrot.lane.b32.xlu0 %v128, 126
      %v142 = vpop.permute.xlu0 %141
      %145 = vrot.lane.b32.xlu0 %v132, 127
      %v146 = vpop.permute.xlu0 %145
      %148 = vrot.lane.b32.xlu0 %v132, 126
      %v149 = vpop.permute.xlu0 %148
      %152 = vrot.lane.b32.xlu0 %v136, 127
      %v153 = vpop.permute.xlu0 %152
      %155 = vrot.lane.b32.xlu0 %v136, 126
      %v156 = vpop.permute.xlu0 %155
      %vm158 = vcmask 588800
      %v160 = vsel %vm158, %v73, 0
      %v163 = vsel %vm158, %v74, 0
      %165 = vmatprep.subr.mxu0 0.0
      %166 = vmatpush1.msra.mxu0 0.0
      %167 = vmatprep.subr.mxu0 0.0
      %168 = vmatpush1.msra.mxu0 0.0
      %169 = vmatprep.subr.mxu0 0.0
      %170 = vmatpush1.msra.mxu0 0.0
      %171 = vmatprep.subr.mxu0 0.0
      %172 = vmatpush1.msra.mxu0 0.0
      %173 = vmatprep.subr.mxu0 0.0
      %174 = vmatpush1.msra.mxu0 0.0
      %175 = vmatprep.subr.mxu0 0.0
      %176 = vmatpush1.msra.mxu0 0.0
      %177 = vmatprep.subr.mxu0 0.0
      %178 = vmatpush1.msra.mxu0 0.0
      %179 = vmatprep.subr.mxu0 0.0
      %180 = vmatpush1.msra.mxu0 %v156
      %181 = vmatprep.subr.mxu0 0.0
      %182 = vmatpush1.msra.mxu0 %v153
      %183 = vmatprep.subr.mxu0 0.0
      %184 = vmatpush1.msra.mxu0 %v136
      %185 = vmatprep.subr.mxu0 0.0
      %186 = vmatpush1.msra.mxu0 %v149
      %187 = vmatprep.subr.mxu0 0.0
      %188 = vmatpush1.msra.mxu0 %v146
      %189 = vmatprep.subr.mxu0 0.0
      %190 = vmatpush1.msra.mxu0 %v132
      %191 = vmatprep.subr.mxu0 0.0
      %192 = vmatpush1.msra.mxu0 %v142
      %193 = vmatprep.subr.mxu0 0.0
      %194 = vmatpush1.msra.mxu0 %v139
      %195 = vmatprep.subr.mxu0 0.0
      %196 = vmatpush1.msra.mxu0 %v128
      %197 = vmatprep.subr.mxu0 0.0
      %198 = vmatpush2.msra.mxu0 0.0
      %199 = vmatprep.subr.mxu0 0.0
      %200 = vmatpush2.msra.mxu0 0.0
      %201 = vmatprep.subr.mxu0 0.0
      %202 = vmatpush2.msra.mxu0 0.0
      %203 = vmatprep.subr.mxu0 0.0
      %204 = vmatpush2.msra.mxu0 0.0
      %205 = vmatprep.subr.mxu0 0.0
      %206 = vmatpush2.msra.mxu0 0.0
      %207 = vmatprep.subr.mxu0 0.0
      %208 = vmatpush2.msra.mxu0 0.0
      %209 = vmatprep.subr.mxu0 0.0
      %210 = vmatpush2.msra.mxu0 0.0
      %211 = vmatprep.subr.mxu0 0.0
      %212 = vmatpush2.msra.mxu0 0.0
      %213 = vmatprep.subr.mxu0 0.0
      %214 = vmatpush2.msra.mxu0 0.0
      %215 = vmatprep.subr.mxu0 0.0
      %216 = vmatpush2.msra.mxu0 0.0
      %217 = vmatprep.subr.mxu0 0.0
      %218 = vmatpush2.msra.mxu0 0.0
      %219 = vmatprep.subr.mxu0 0.0
      %220 = vmatpush2.msra.mxu0 0.0
      %221 = vmatprep.subr.mxu0 0.0
      %222 = vmatpush2.msra.mxu0 0.0
      %223 = vmatprep.subr.mxu0 0.0
      %224 = vmatpush2.msra.mxu0 0.0
      %225 = vmatprep.subr.mxu0 0.0
      %226 = vmatpush2.msra.mxu0 0.0
      %227 = vmatprep.subr.mxu0 0.0
      %228 = vmatpush2.msra.mxu0 0.0
      %229 = vmatprep.mubr.f32.mxu0 0.0
      %230 = vmatmul.mubr.f32.gmra.mxu0 %v160
      %v231 = vpop.f32.mrf.mxu0
      %v232 = vadd.f32 0.0, %v231
      %v233 = vpop.f32.mrf.mxu0
      %234 = vmatprep.mubr.f32.mxu0 0.0
      %235 = vmatmul.mubr.f32.gmra.mxu0 %v163
      %v236 = vpop.f32.mrf.mxu0
      %v237 = vadd.f32 0.0, %v236
      %v238 = vpop.f32.mrf.mxu0
      %239 = vdwg.mxu0
      %v240 = vmax.f32 %v232, 0.0
      %v241 = vmax.f32 %v237, 0.0
      %s242 = smul.u32 %s121, 16
      %s243 = scalar_lea.vmem [#allocation2], %s242
      %vm244 = vcmask 277504
      %245 = vst.msk [vmem:[%s243] sm:$0xff] %vm244, %v240
      %246 = vst.msk [vmem:[%s243 + $0x8] sm:$0xff] %vm244, %v241
    $region42: #{hybrid_convnet_forward.2} parent=1 // loop_footer
      %s125 = sadd.s32 1, %s121
    $region43: #{hybrid_convnet_forward.2} parent=1 // loop_footer_branch
      %120 = sbr.rel target = $region39
    $region44: #{hybrid_convnet_forward.2} parent=1 // loop_exit
      _
    loop: start=0, step=1, limit=16
    $region45: #{hybrid_convnet_forward.2} parent=1 // loop_pre_header
      _
    $region46: #{hybrid_convnet_forward.2} parent=1 // loop_header
      %s248 = sphi 0, %s252
      %p249 = scmp.ge.s32.totalorder %s248, 16
    $region47: #{hybrid_convnet_forward.2} parent=1 // loop_header_branch
      %251 = sbr.rel (%p249) target = $region51
    $region48: #{hybrid_convnet_forward.2} parent=1 // loop_body
      %s253 = smul.u32 %s248, 2
      %s254 = smul.u32 %s253, 16
      %s255 = scalar_lea.vmem [#allocation2], %s254
      %v256 = vld [vmem:[%s255] sm:$0xff]
      %v257 = vld [vmem:[%s255 + $0x8] sm:$0xff]
      %s258 = sadd.s32 %s253, 1
      %s259 = smul.u32 %s258, 16
      %s260 = scalar_lea.vmem [#allocation2], %s259
      %v261 = vld [vmem:[%s260] sm:$0xff]
      %v262 = vld [vmem:[%s260 + $0x8] sm:$0xff]
      %s263 = sadd.s32 %s253, 2
      %s264 = smul.u32 %s263, 16
      %s265 = scalar_lea.vmem [#allocation2], %s264
      %v266 = vld [vmem:[%s265] sm:$0xff]
      %v267 = vld [vmem:[%s265 + $0x8] sm:$0xff]
      %270 = vrot.lane.b32.xlu0 %v256, 127
      %v271 = vpop.permute.xlu0 %270
      %272 = vrot.lane.b32.xlu0 %v257, 127
      %v273 = vpop.permute.xlu0 %272
      %276 = vrot.lane.b32.xlu0 %v256, 126
      %v277 = vpop.permute.xlu0 %276
      %278 = vrot.lane.b32.xlu0 %v257, 126
      %v279 = vpop.permute.xlu0 %278
      %284 = vrot.lane.b32.xlu0 %v261, 127
      %v285 = vpop.permute.xlu0 %284
      %286 = vrot.lane.b32.xlu0 %v262, 127
      %v287 = vpop.permute.xlu0 %286
      %290 = vrot.lane.b32.xlu0 %v261, 126
      %v291 = vpop.permute.xlu0 %290
      %292 = vrot.lane.b32.xlu0 %v262, 126
      %v293 = vpop.permute.xlu0 %292
      %298 = vrot.lane.b32.xlu0 %v266, 127
      %v299 = vpop.permute.xlu0 %298
      %300 = vrot.lane.b32.xlu0 %v267, 127
      %v301 = vpop.permute.xlu0 %300
      %304 = vrot.lane.b32.xlu0 %v266, 126
      %v305 = vpop.permute.xlu0 %304
      %306 = vrot.lane.b32.xlu0 %v267, 126
      %v307 = vpop.permute.xlu0 %306
      %311 = vset.pattern.permute.xlu0 0
      %312 = vperm.xlu0 %311, %v83
      %v313 = vpop.permute.xlu0 %312
      %316 = vset.pattern.permute.xlu0 0
      %317 = vperm.xlu0 %316, %v84
      %v318 = vpop.permute.xlu0 %317
      %321 = vset.pattern.permute.xlu0 0
      %322 = vperm.xlu0 %321, %v85
      %v323 = vpop.permute.xlu0 %322
      %326 = vset.pattern.permute.xlu0 0
      %327 = vperm.xlu0 %326, %v86
      %v328 = vpop.permute.xlu0 %327
      %vm330 = vcmask 130048
      %v332 = vsel %vm330, %v76, 0
      %v335 = vsel %vm330, %v78, 0
      %v338 = vsel %vm330, %v80, 0
      %v341 = vsel %vm330, %v82, 0
      %343 = vmatprep.subr.mxu0 0.0
      %344 = vmatpush1.msra.mxu0 %v301
      %345 = vmatprep.subr.mxu0 0.0
      %346 = vmatpush1.msra.mxu0 %v299
      %347 = vmatprep.subr.mxu0 0.0
      %348 = vmatpush1.msra.mxu0 %v267
      %349 = vmatprep.subr.mxu0 0.0
      %350 = vmatpush1.msra.mxu0 %v266
      %351 = vmatprep.subr.mxu0 0.0
      %352 = vmatpush1.msra.mxu0 %v293
      %353 = vmatprep.subr.mxu0 0.0
      %354 = vmatpush1.msra.mxu0 %v291
      %355 = vmatprep.subr.mxu0 0.0
      %356 = vmatpush1.msra.mxu0 %v287
      %357 = vmatprep.subr.mxu0 0.0
      %358 = vmatpush1.msra.mxu0 %v285
      %359 = vmatprep.subr.mxu0 0.0
      %360 = vmatpush1.msra.mxu0 %v262
      %361 = vmatprep.subr.mxu0 0.0
      %362 = vmatpush1.msra.mxu0 %v261
      %363 = vmatprep.subr.mxu0 0.0
      %364 = vmatpush1.msra.mxu0 %v279
      %365 = vmatprep.subr.mxu0 0.0
      %366 = vmatpush1.msra.mxu0 %v277
      %367 = vmatprep.subr.mxu0 0.0
      %368 = vmatpush1.msra.mxu0 %v273
      %369 = vmatprep.subr.mxu0 0.0
      %370 = vmatpush1.msra.mxu0 %v271
      %371 = vmatprep.subr.mxu0 0.0
      %372 = vmatpush1.msra.mxu0 %v257
      %373 = vmatprep.subr.mxu0 0.0
      %374 = vmatpush1.msra.mxu0 %v256
      %375 = vmatprep.subr.mxu0 0.0
      %376 = vmatpush2.msra.mxu0 0.0
      %377 = vmatprep.subr.mxu0 0.0
      %378 = vmatpush2.msra.mxu0 0.0
      %379 = vmatprep.subr.mxu0 0.0
      %380 = vmatpush2.msra.mxu0 0.0
      %381 = vmatprep.subr.mxu0 0.0
      %382 = vmatpush2.msra.mxu0 0.0
      %383 = vmatprep.subr.mxu0 0.0
      %384 = vmatpush2.msra.mxu0 0.0
      %385 = vmatprep.subr.mxu0 0.0
      %386 = vmatpush2.msra.mxu0 0.0
      %387 = vmatprep.subr.mxu0 0.0
      %388 = vmatpush2.msra.mxu0 0.0
      %389 = vmatprep.subr.mxu0 0.0
      %390 = vmatpush2.msra.mxu0 0.0
      %391 = vmatprep.subr.mxu0 0.0
      %392 = vmatpush2.msra.mxu0 0.0
      %393 = vmatprep.subr.mxu0 0.0
      %394 = vmatpush2.msra.mxu0 0.0
      %395 = vmatprep.subr.mxu0 0.0
      %396 = vmatpush2.msra.mxu0 0.0
      %397 = vmatprep.subr.mxu0 0.0
      %398 = vmatpush2.msra.mxu0 0.0
      %399 = vmatprep.subr.mxu0 0.0
      %400 = vmatpush2.msra.mxu0 0.0
      %401 = vmatprep.subr.mxu0 0.0
      %402 = vmatpush2.msra.mxu0 0.0
      %403 = vmatprep.subr.mxu0 0.0
      %404 = vmatpush2.msra.mxu0 %v307
      %405 = vmatprep.subr.mxu0 0.0
      %406 = vmatpush2.msra.mxu0 %v305
      %407 = vmatprep.mubr.f32.mxu0 %v332
      %408 = vmatmul.mubr.f32.gmra.mxu0 %v75
      %v409 = vpop.f32.mrf.mxu0
      %v410 = vadd.f32 %v313, %v409
      %v411 = vpop.f32.mrf.mxu0
      %412 = vmatprep.mubr.f32.mxu0 %v335
      %413 = vmatmul.mubr.f32.gmra.mxu0 %v77
      %v414 = vpop.f32.mrf.mxu0
      %v415 = vadd.f32 %v318, %v414
      %v416 = vpop.f32.mrf.mxu0
      %417 = vmatprep.mubr.f32.mxu0 %v338
      %418 = vmatmul.mubr.f32.gmra.mxu0 %v79
      %v419 = vpop.f32.mrf.mxu0
      %v420 = vadd.f32 %v323, %v419
      %v421 = vpop.f32.mrf.mxu0
      %422 = vmatprep.mubr.f32.mxu0 %v341
      %423 = vmatmul.mubr.f32.gmra.mxu0 %v81
      %v424 = vpop.f32.mrf.mxu0
      %v425 = vadd.f32 %v328, %v424
      %v426 = vpop.f32.mrf.mxu0
      %427 = vdwg.mxu0
      %v428 = vmax.f32 %v410, 0.0
      %v429 = vmax.f32 %v415, 0.0
      %v430 = vmax.f32 %v420, 0.0
      %v431 = vmax.f32 %v425, 0.0
      %s432 = sadd.s32 %s253, 3
      %s433 = smul.u32 %s432, 16
      %s434 = scalar_lea.vmem [#allocation2], %s433
      %v435 = vld [vmem:[%s434] sm:$0xff]
      %v436 = vld [vmem:[%s434 + $0x8] sm:$0xff]
      %439 = vrot.lane.b32.xlu0 %v435, 127
      %v440 = vpop.permute.xlu0 %439
      %441 = vrot.lane.b32.xlu0 %v436, 127
      %v442 = vpop.permute.xlu0 %441
      %445 = vrot.lane.b32.xlu0 %v435, 126
      %v446 = vpop.permute.xlu0 %445
      %447 = vrot.lane.b32.xlu0 %v436, 126
      %v448 = vpop.permute.xlu0 %447
      %451 = vmatprep.subr.mxu0 0.0
      %452 = vmatpush1.msra.mxu0 %v442
      %453 = vmatprep.subr.mxu0 0.0
      %454 = vmatpush1.msra.mxu0 %v440
      %455 = vmatprep.subr.mxu0 0.0
      %456 = vmatpush1.msra.mxu0 %v436
      %457 = vmatprep.subr.mxu0 0.0
      %458 = vmatpush1.msra.mxu0 %v435
      %459 = vmatprep.subr.mxu0 0.0
      %460 = vmatpush1.msra.mxu0 %v307
      %461 = vmatprep.subr.mxu0 0.0
      %462 = vmatpush1.msra.mxu0 %v305
      %463 = vmatprep.subr.mxu0 0.0
      %464 = vmatpush1.msra.mxu0 %v301
      %465 = vmatprep.subr.mxu0 0.0
      %466 = vmatpush1.msra.mxu0 %v299
      %467 = vmatprep.subr.mxu0 0.0
      %468 = vmatpush1.msra.mxu0 %v267
      %469 = vmatprep.subr.mxu0 0.0
      %470 = vmatpush1.msra.mxu0 %v266
      %471 = vmatprep.subr.mxu0 0.0
      %472 = vmatpush1.msra.mxu0 %v293
      %473 = vmatprep.subr.mxu0 0.0
      %474 = vmatpush1.msra.mxu0 %v291
      %475 = vmatprep.subr.mxu0 0.0
      %476 = vmatpush1.msra.mxu0 %v287
      %477 = vmatprep.subr.mxu0 0.0
      %478 = vmatpush1.msra.mxu0 %v285
      %479 = vmatprep.subr.mxu0 0.0
      %480 = vmatpush1.msra.mxu0 %v262
      %481 = vmatprep.subr.mxu0 0.0
      %482 = vmatpush1.msra.mxu0 %v261
      %483 = vmatprep.subr.mxu0 0.0
      %484 = vmatpush2.msra.mxu0 0.0
      %485 = vmatprep.subr.mxu0 0.0
      %486 = vmatpush2.msra.mxu0 0.0
      %487 = vmatprep.subr.mxu0 0.0
      %488 = vmatpush2.msra.mxu0 0.0
      %489 = vmatprep.subr.mxu0 0.0
      %490 = vmatpush2.msra.mxu0 0.0
      %491 = vmatprep.subr.mxu0 0.0
      %492 = vmatpush2.msra.mxu0 0.0
      %493 = vmatprep.subr.mxu0 0.0
      %494 = vmatpush2.msra.mxu0 0.0
      %495 = vmatprep.subr.mxu0 0.0
      %496 = vmatpush2.msra.mxu0 0.0
      %497 = vmatprep.subr.mxu0 0.0
      %498 = vmatpush2.msra.mxu0 0.0
      %499 = vmatprep.subr.mxu0 0.0
      %500 = vmatpush2.msra.mxu0 0.0
      %501 = vmatprep.subr.mxu0 0.0
      %502 = vmatpush2.msra.mxu0 0.0
      %503 = vmatprep.subr.mxu0 0.0
      %504 = vmatpush2.msra.mxu0 0.0
      %505 = vmatprep.subr.mxu0 0.0
      %506 = vmatpush2.msra.mxu0 0.0
      %507 = vmatprep.subr.mxu0 0.0
      %508 = vmatpush2.msra.mxu0 0.0
      %509 = vmatprep.subr.mxu0 0.0
      %510 = vmatpush2.msra.mxu0 0.0
      %511 = vmatprep.subr.mxu0 0.0
      %512 = vmatpush2.msra.mxu0 %v448
      %513 = vmatprep.subr.mxu0 0.0
      %514 = vmatpush2.msra.mxu0 %v446
      %515 = vmatprep.mubr.f32.mxu0 %v332
      %516 = vmatmul.mubr.f32.gmra.mxu0 %v75
      %v517 = vpop.f32.mrf.mxu0
      %v518 = vadd.f32 %v313, %v517
      %v519 = vpop.f32.mrf.mxu0
      %520 = vmatprep.mubr.f32.mxu0 %v335
      %521 = vmatmul.mubr.f32.gmra.mxu0 %v77
      %v522 = vpop.f32.mrf.mxu0
      %v523 = vadd.f32 %v318, %v522
      %v524 = vpop.f32.mrf.mxu0
      %525 = vmatprep.mubr.f32.mxu0 %v338
      %526 = vmatmul.mubr.f32.gmra.mxu0 %v79
      %v527 = vpop.f32.mrf.mxu0
      %v528 = vadd.f32 %v323, %v527
      %v529 = vpop.f32.mrf.mxu0
      %530 = vmatprep.mubr.f32.mxu0 %v341
      %531 = vmatmul.mubr.f32.gmra.mxu0 %v81
      %v532 = vpop.f32.mrf.mxu0
      %v533 = vadd.f32 %v328, %v532
      %v534 = vpop.f32.mrf.mxu0
      %535 = vdwg.mxu0
      %v536 = vmax.f32 %v518, 0.0
      %v537 = vmax.f32 %v523, 0.0
      %v538 = vmax.f32 %v528, 0.0
      %v539 = vmax.f32 %v533, 0.0
      %v540 = vmax.f32 %v428, %v536
      %v541 = vmax.f32 %v429, %v537
      %v542 = vmax.f32 %v430, %v538
      %v543 = vmax.f32 %v431, %v539
      %vm544 = vcmask 261120
      %v546 = vsel %vm544, %v540, 0
      %v549 = vsel %vm544, %v541, 0
      %v552 = vsel %vm544, %v542, 0
      %v555 = vsel %vm544, %v543, 0
      %557 = vmatprep.subr.mxu0 0.0
      %558 = vmatpush1.msra.mxu0 0.0
      %559 = vmatprep.subr.mxu0 0.0
      %560 = vmatpush1.msra.mxu0 0.0
      %561 = vmatprep.subr.mxu0 0.0
      %562 = vmatpush1.msra.mxu0 0.0
      %563 = vmatprep.subr.mxu0 0.0
      %564 = vmatpush1.msra.mxu0 0.0
      %565 = vmatprep.subr.mxu0 0.0
      %566 = vmatpush1.msra.mxu0 0.0
      %567 = vmatprep.subr.mxu0 0.0
      %568 = vmatpush1.msra.mxu0 0.0
      %569 = vmatprep.subr.mxu0 0.0
      %570 = vmatpush1.msra.mxu0 0.0
      %571 = vmatprep.subr.mxu0 0.0
      %572 = vmatpush1.msra.mxu0 0.0
      %573 = vmatprep.subr.mxu0 0.0
      %574 = vmatpush1.msra.mxu0 0.0
      %575 = vmatprep.subr.mxu0 0.0
      %576 = vmatpush1.msra.mxu0 0.0
      %577 = vmatprep.subr.mxu0 0.0
      %578 = vmatpush1.msra.mxu0 0.0
      %579 = vmatprep.subr.mxu0 0.0
      %580 = vmatpush1.msra.mxu0 0.0
      %581 = vmatprep.subr.mxu0 0.0
      %582 = vmatpush1.msra.mxu0 %v106
      %583 = vmatprep.subr.mxu0 0.0
      %584 = vmatpush1.msra.mxu0 %v105
      %585 = vmatprep.subr.mxu0 0.0
      %586 = vmatpush1.msra.mxu0 %v104
      %587 = vmatprep.subr.mxu0 0.0
      %588 = vmatpush1.msra.mxu0 %v103
      %589 = vmatprep.subr.mxu0 0.0
      %590 = vmatpush2.msra.mxu0 0.0
      %591 = vmatprep.subr.mxu0 0.0
      %592 = vmatpush2.msra.mxu0 0.0
      %593 = vmatprep.subr.mxu0 0.0
      %594 = vmatpush2.msra.mxu0 0.0
      %595 = vmatprep.subr.mxu0 0.0
      %596 = vmatpush2.msra.mxu0 0.0
      %597 = vmatprep.subr.mxu0 0.0
      %598 = vmatpush2.msra.mxu0 0.0
      %599 = vmatprep.subr.mxu0 0.0
      %600 = vmatpush2.msra.mxu0 0.0
      %601 = vmatprep.subr.mxu0 0.0
      %602 = vmatpush2.msra.mxu0 0.0
      %603 = vmatprep.subr.mxu0 0.0
      %604 = vmatpush2.msra.mxu0 0.0
      %605 = vmatprep.subr.mxu0 0.0
      %606 = vmatpush2.msra.mxu0 0.0
      %607 = vmatprep.subr.mxu0 0.0
      %608 = vmatpush2.msra.mxu0 0.0
      %609 = vmatprep.subr.mxu0 0.0
      %610 = vmatpush2.msra.mxu0 0.0
      %611 = vmatprep.subr.mxu0 0.0
      %612 = vmatpush2.msra.mxu0 0.0
      %613 = vmatprep.subr.mxu0 0.0
      %614 = vmatpush2.msra.mxu0 0.0
      %615 = vmatprep.subr.mxu0 0.0
      %616 = vmatpush2.msra.mxu0 0.0
      %617 = vmatprep.subr.mxu0 0.0
      %618 = vmatpush2.msra.mxu0 0.0
      %619 = vmatprep.subr.mxu0 0.0
      %620 = vmatpush2.msra.mxu0 0.0
      %621 = vmatprep.mubr.f32.mxu0 0.0
      %622 = vmatmul.mubr.f32.gmra.mxu0 %v546
      %v623 = vpop.f32.mrf.mxu0
      %v624 = vadd.f32 0.0, %v623
      %v625 = vpop.f32.mrf.mxu0
      %626 = vmatprep.mubr.f32.mxu0 0.0
      %627 = vmatmul.mubr.f32.gmra.mxu0 %v549
      %v628 = vpop.f32.mrf.mxu0
      %v629 = vadd.f32 0.0, %v628
      %v630 = vpop.f32.mrf.mxu0
      %631 = vmatprep.mubr.f32.mxu0 0.0
      %632 = vmatmul.mubr.f32.gmra.mxu0 %v552
      %v633 = vpop.f32.mrf.mxu0
      %v634 = vadd.f32 0.0, %v633
      %v635 = vpop.f32.mrf.mxu0
      %636 = vmatprep.mubr.f32.mxu0 0.0
      %637 = vmatmul.mubr.f32.gmra.mxu0 %v555
      %v638 = vpop.f32.mrf.mxu0
      %v639 = vadd.f32 0.0, %v638
      %v640 = vpop.f32.mrf.mxu0
      %641 = vdwg.mxu0
      %642 = vmatprep.subr.mxu0 0.0
      %643 = vmatpush1.msra.mxu0 0.0
      %644 = vmatprep.subr.mxu0 0.0
      %645 = vmatpush1.msra.mxu0 0.0
      %646 = vmatprep.subr.mxu0 0.0
      %647 = vmatpush1.msra.mxu0 0.0
      %648 = vmatprep.subr.mxu0 0.0
      %649 = vmatpush1.msra.mxu0 0.0
      %650 = vmatprep.subr.mxu0 0.0
      %651 = vmatpush1.msra.mxu0 0.0
      %652 = vmatprep.subr.mxu0 0.0
      %653 = vmatpush1.msra.mxu0 0.0
      %654 = vmatprep.subr.mxu0 0.0
      %655 = vmatpush1.msra.mxu0 0.0
      %656 = vmatprep.subr.mxu0 0.0
      %657 = vmatpush1.msra.mxu0 0.0
      %658 = vmatprep.subr.mxu0 0.0
      %659 = vmatpush1.msra.mxu0 0.0
      %660 = vmatprep.subr.mxu0 0.0
      %661 = vmatpush1.msra.mxu0 0.0
      %662 = vmatprep.subr.mxu0 0.0
      %663 = vmatpush1.msra.mxu0 0.0
      %664 = vmatprep.subr.mxu0 0.0
      %665 = vmatpush1.msra.mxu0 0.0
      %666 = vmatprep.subr.mxu0 0.0
      %667 = vmatpush1.msra.mxu0 %v119
      %668 = vmatprep.subr.mxu0 0.0
      %669 = vmatpush1.msra.mxu0 %v118
      %670 = vmatprep.subr.mxu0 0.0
      %671 = vmatpush1.msra.mxu0 %v117
      %672 = vmatprep.subr.mxu0 0.0
      %673 = vmatpush1.msra.mxu0 %v116
      %674 = vmatprep.subr.mxu0 0.0
      %675 = vmatpush2.msra.mxu0 0.0
      %676 = vmatprep.subr.mxu0 0.0
      %677 = vmatpush2.msra.mxu0 0.0
      %678 = vmatprep.subr.mxu0 0.0
      %679 = vmatpush2.msra.mxu0 0.0
      %680 = vmatprep.subr.mxu0 0.0
      %681 = vmatpush2.msra.mxu0 0.0
      %682 = vmatprep.subr.mxu0 0.0
      %683 = vmatpush2.msra.mxu0 0.0
      %684 = vmatprep.subr.mxu0 0.0
      %685 = vmatpush2.msra.mxu0 0.0
      %686 = vmatprep.subr.mxu0 0.0
      %687 = vmatpush2.msra.mxu0 0.0
      %688 = vmatprep.subr.mxu0 0.0
      %689 = vmatpush2.msra.mxu0 0.0
      %690 = vmatprep.subr.mxu0 0.0
      %691 = vmatpush2.msra.mxu0 0.0
      %692 = vmatprep.subr.mxu0 0.0
      %693 = vmatpush2.msra.mxu0 0.0
      %694 = vmatprep.subr.mxu0 0.0
      %695 = vmatpush2.msra.mxu0 0.0
      %696 = vmatprep.subr.mxu0 0.0
      %697 = vmatpush2.msra.mxu0 0.0
      %698 = vmatprep.subr.mxu0 0.0
      %699 = vmatpush2.msra.mxu0 0.0
      %700 = vmatprep.subr.mxu0 0.0
      %701 = vmatpush2.msra.mxu0 0.0
      %702 = vmatprep.subr.mxu0 0.0
      %703 = vmatpush2.msra.mxu0 0.0
      %704 = vmatprep.subr.mxu0 0.0
      %705 = vmatpush2.msra.mxu0 0.0
      %706 = vmatprep.mubr.f32.mxu0 0.0
      %707 = vmatmul.mubr.f32.gmra.mxu0 %v546
      %v708 = vpop.f32.mrf.mxu0
      %v709 = vadd.f32 0.0, %v708
      %v710 = vpop.f32.mrf.mxu0
      %711 = vmatprep.mubr.f32.mxu0 0.0
      %712 = vmatmul.mubr.f32.gmra.mxu0 %v549
      %v713 = vpop.f32.mrf.mxu0
      %v714 = vadd.f32 0.0, %v713
      %v715 = vpop.f32.mrf.mxu0
      %716 = vmatprep.mubr.f32.mxu0 0.0
      %717 = vmatmul.mubr.f32.gmra.mxu0 %v552
      %v718 = vpop.f32.mrf.mxu0
      %v719 = vadd.f32 0.0, %v718
      %v720 = vpop.f32.mrf.mxu0
      %721 = vmatprep.mubr.f32.mxu0 0.0
      %722 = vmatmul.mubr.f32.gmra.mxu0 %v555
      %v723 = vpop.f32.mrf.mxu0
      %v724 = vadd.f32 0.0, %v723
      %v725 = vpop.f32.mrf.mxu0
      %726 = vdwg.mxu0
      %v727 = vmax.f32 %v624, %v709
      %v728 = vmax.f32 %v629, %v714
      %v729 = vmax.f32 %v634, %v719
      %v730 = vmax.f32 %v639, %v724
      %s731 = smul.u32 %s248, 32
      %s732 = scalar_lea.vmem %s6, %s731
      %733 = vst.msk [vmem:[%s732] sm:$0xff] %vm330, %v727
      %734 = vst.msk [vmem:[%s732 + $0x8] sm:$0xff] %vm330, %v728
      %735 = vst.msk [vmem:[%s732 + $0x10] sm:$0xff] %vm330, %v729
      %736 = vst.msk [vmem:[%s732 + $0x18] sm:$0xff] %vm330, %v730
    $region49: #{hybrid_convnet_forward.2} parent=1 // loop_footer
      %s252 = sadd.s32 1, %s248
    $region50: #{hybrid_convnet_forward.2} parent=1 // loop_footer_branch
      %247 = sbr.rel target = $region46
    $region51: #{hybrid_convnet_forward.2} parent=1 // loop_exit
      _
    // Predicated region
    $region52: #{hybrid_convnet_forward.2} parent=1 // pred_check
      _
    $region53: #{hybrid_convnet_forward.2} parent=1 // pred_check_branch
      %738 = sbr.rel (0) target = $region55
    $region54: #{hybrid_convnet_forward.2} parent=1 // pred_region
      _
    $region55: #{hybrid_convnet_forward.2} parent=1 // pred_fallthru
      _
    // Predicated region
    $region56: #{hybrid_convnet_forward.2} parent=1 // pred_check
      _
    $region57: #{hybrid_convnet_forward.2} parent=1 // pred_check_branch
      %740 = sbr.rel (0) target = $region59
    $region58: #{hybrid_convnet_forward.2} parent=1 // pred_region
      _
    $region59: #{hybrid_convnet_forward.2} parent=1 // pred_fallthru
      _
    %741 = vsyncpa [#allocation5], 1
    %742 = vsyncpa [#allocation7], 1

// kernel: hybrid_convnet_forward.3
$region0: #{hybrid_convnet_forward.3}
  #allocation0 [shape = 'u32[]', space=smem, size = 0x4, offset = 0x4, fixed_abs, tag = 'smem constant byte address 0x4 - core index']
  #allocation1 [shape = 'u32[144,128]{1,0:T(1,128)}', space=vmem, size = 0x12000, scoped, tag = 'internal scratch']
  #allocation2 [shape = 'f32[1,128]{1,0:T(1,128)}', space=vmem, size = 0x200, scoped, tag = 'scratch operand']
  %s0 = inlined_call_operand.vmem [shape: f32[1,8192], index: 0, kind: input, shape index: {}]
  %s1 = inlined_call_operand.hbm [shape: bf16[8192,128], index: 1, kind: input, shape index: {}]
  %s2 = inlined_call_operand.hbm [shape: f32[1,128], index: 2, kind: input, shape index: {}]
  %s3 = inlined_call_operand.hbm [shape: f32[128,128], index: 3, kind: input, shape index: {}]
  %s4 = inlined_call_operand.hbm [shape: f32[1,128], index: 4, kind: input, shape index: {}]
  %s5 = inlined_call_operand.hbm [shape: f32[1,128], index: 5, kind: output, shape index: {}]
  %s6 = sld [smem:[#allocation0]]
  $region77: #{hybrid_convnet_forward.3} parent=0
    _
  %s8 = ssub.s32 1, %s6
  %s9 = scalar_select 0, %s8, %s6
  $region1: #{hybrid_convnet_forward.3} parent=0
    #allocation3 [shape = 'u8[1048576]{0}', space=vmem, size = 0x100000, scoped, tag = 'input window, operand 1']
    #allocation4 [shape = 's32[2]{0}', space=sflag, size = 0x8, scoped, tag = 'scoped memory for hybrid_convnet_forward.3']
    #allocation5 [shape = 's32[2]{0}', space=sflag, size = 0x8, scoped, tag = 'scoped memory for hybrid_convnet_forward.3']
    #allocation6 [shape = 'u8[512]{0}', space=vmem, size = 0x400, scoped, tag = 'input window, operand 2, single buffered']
    #allocation7 [shape = 's32[1]{0}', space=sflag, size = 0x4, scoped, tag = 'scoped memory for hybrid_convnet_forward.3']
    #allocation8 [shape = 'u8[65536]{0}', space=vmem, size = 0x10000, scoped, tag = 'input window, operand 3, single buffered']
    #allocation9 [shape = 'u8[512]{0}', space=vmem, size = 0x400, scoped, tag = 'input window, operand 4, single buffered']
    #allocation10 [shape = 's32[1]{0}', space=sflag, size = 0x4, scoped, tag = 'scoped memory for hybrid_convnet_forward.3']
    #allocation11 [shape = 'u8[512]{0}', space=vmem, size = 0x400, scoped, tag = 'output window, operand 0, single buffered']
    %10 = vsyncpa [#allocation4], 0
    %s11 = scalar_lea.sflag [#allocation4], 1
    %12 = vsyncpa %s11, 0
    %13 = vsyncpa [#allocation7], 0
    %14 = vsyncpa [#allocation10], 0
    %15 = vsyncpa [#allocation5], 0
    loop: start=0, step=1, limit=6
    $region2: #{hybrid_convnet_forward.3} parent=1 // loop_pre_header
      _
    $region3: #{hybrid_convnet_forward.3} parent=1 // loop_header
      %s17 = sphi 0, %s21
      %p18 = scmp.ge.s32.totalorder %s17, 6
      %s27 = sphi 0, %s29
      %s30 = sphi 0, %s27
      %s31 = sphi 0, %s30
      %s47 = sphi 0, %s31
      %s53 = sphi 0, %s55
      %s56 = sphi 0, %s53
      %s57 = sphi 0, %s56
      %s73 = sphi 0, %s57
      %s77 = sphi 0, %s77
      %s79 = sphi 0, %s77
      %s80 = sphi 0, %s79
      %s94 = sphi 0, %s80
      %s98 = sphi 0, %s98
      %s100 = sphi 0, %s98
      %s101 = sphi 0, %s100
      %s115 = sphi 0, %s101
      %s119 = sphi 0, %s119
      %s121 = sphi 0, %s119
      %s122 = sphi 0, %s121
      %s136 = sphi 0, %s122
      %s140 = sphi 0, %s140
      %s142 = sphi 0, %s140
      %s143 = sphi 0, %s142
      %s157 = sphi 0, %s143
    $region4: #{hybrid_convnet_forward.3} parent=1 // loop_header_branch
      %20 = sbr.rel (%p18) target = $region8
    $region5: #{hybrid_convnet_forward.3} parent=1 // loop_body
      %s22 = ssub.s32 %s17, 1
      %s23 = ssub.s32 %s17, 2
      %s24 = sadd.s32 %s17, 1
      %s25 = ssub.s32 %s17, %s24
      %p26 = scmp.eq.s32.totalorder %s25, 0
      %s28 = sadd.s32 %s27, 1
      %s29 = scalar_select %p26, %s27, %s28
      %p32 = pneg %p26
      %p33 = scmp.eq.s32.totalorder %s17, 3
      %p34 = por %p32, %p33
      %p35 = scmp.ne.s32.totalorder %s27, %s30
      %p36 = scmp.eq.s32.totalorder %s17, 0
      %p37 = por %p35, %p36
      %p38 = scmp.ne.s32.totalorder %s27, %s30
      %p39 = scmp.eq.s32.totalorder %s22, 3
      %p40 = por %p38, %p39
      %p41 = scmp.ne.s32.totalorder %s30, %s31
      %p42 = scmp.eq.s32.totalorder %s22, 0
      %p43 = por %p41, %p42
      %p44 = scmp.ne.s32.totalorder %s30, %s31
      %p45 = scmp.eq.s32.totalorder %s23, 3
      %p46 = por %p44, %p45
      %p48 = scmp.ne.s32.totalorder %s31, %s47
      %p49 = scmp.eq.s32.totalorder %s23, 0
      %p50 = por %p48, %p49
      %s51 = ssub.s32 %s17, %s24
      %p52 = scmp.eq.s32.totalorder %s51, 0
      %s54 = sadd.s32 %s53, 1
      %s55 = scalar_select %p52, %s53, %s54
      %p58 = pneg %p52
      %p59 = scmp.eq.s32.totalorder %s17, 3
      %p60 = por %p58, %p59
      %p61 = scmp.ne.s32.totalorder %s53, %s56
      %p62 = scmp.eq.s32.totalorder %s17, 0
      %p63 = por %p61, %p62
      %p64 = scmp.ne.s32.totalorder %s53, %s56
      %p65 = scmp.eq.s32.totalorder %s22, 3
      %p66 = por %p64, %p65
      %p67 = scmp.ne.s32.totalorder %s56, %s57
      %p68 = scmp.eq.s32.totalorder %s22, 0
      %p69 = por %p67, %p68
      %p70 = scmp.ne.s32.totalorder %s56, %s57
      %p71 = scmp.eq.s32.totalorder %s23, 3
      %p72 = por %p70, %p71
      %p74 = scmp.ne.s32.totalorder %s57, %s73
      %p75 = scmp.eq.s32.totalorder %s23, 0
      %p76 = por %p74, %p75
      %s78 = sadd.s32 %s77, 1
      %p81 = scmp.eq.s32.totalorder %s17, 3
      %p82 = scmp.ne.s32.totalorder %s77, %s79
      %p83 = scmp.eq.s32.totalorder %s17, 0
      %p84 = por %p82, %p83
      %p85 = scmp.ne.s32.totalorder %s77, %s79
      %p86 = scmp.eq.s32.totalorder %s22, 3
      %p87 = por %p85, %p86
      %p88 = scmp.ne.s32.totalorder %s79, %s80
      %p89 = scmp.eq.s32.totalorder %s22, 0
      %p90 = por %p88, %p89
      %p91 = scmp.ne.s32.totalorder %s79, %s80
      %p92 = scmp.eq.s32.totalorder %s23, 3
      %p93 = por %p91, %p92
      %p95 = scmp.ne.s32.totalorder %s80, %s94
      %p96 = scmp.eq.s32.totalorder %s23, 0
      %p97 = por %p95, %p96
      %s99 = sadd.s32 %s98, 1
      %p102 = scmp.eq.s32.totalorder %s17, 3
      %p103 = scmp.ne.s32.totalorder %s98, %s100
      %p104 = scmp.eq.s32.totalorder %s17, 0
      %p105 = por %p103, %p104
      %p106 = scmp.ne.s32.totalorder %s98, %s100
      %p107 = scmp.eq.s32.totalorder %s22, 3
      %p108 = por %p106, %p107
      %p109 = scmp.ne.s32.totalorder %s100, %s101
      %p110 = scmp.eq.s32.totalorder %s22, 0
      %p111 = por %p109, %p110
      %p112 = scmp.ne.s32.totalorder %s100, %s101
      %p113 = scmp.eq.s32.totalorder %s23, 3
      %p114 = por %p112, %p113
      %p116 = scmp.ne.s32.totalorder %s101, %s115
      %p117 = scmp.eq.s32.totalorder %s23, 0
      %p118 = por %p116, %p117
      %s120 = sadd.s32 %s119, 1
      %p123 = scmp.eq.s32.totalorder %s17, 3
      %p124 = scmp.ne.s32.totalorder %s119, %s121
      %p125 = scmp.eq.s32.totalorder %s17, 0
      %p126 = por %p124, %p125
      %p127 = scmp.ne.s32.totalorder %s119, %s121
      %p128 = scmp.eq.s32.totalorder %s22, 3
      %p129 = por %p127, %p128
      %p130 = scmp.ne.s32.totalorder %s121, %s122
      %p131 = scmp.eq.s32.totalorder %s22, 0
      %p132 = por %p130, %p131
      %p133 = scmp.ne.s32.totalorder %s121, %s122
      %p134 = scmp.eq.s32.totalorder %s23, 3
      %p135 = por %p133, %p134
      %p137 = scmp.ne.s32.totalorder %s122, %s136
      %p138 = scmp.eq.s32.totalorder %s23, 0
      %p139 = por %p137, %p138
      %s141 = sadd.s32 %s140, 1
      %p144 = scmp.eq.s32.totalorder %s17, 3
      %p145 = scmp.ne.s32.totalorder %s140, %s142
      %p146 = scmp.eq.s32.totalorder %s17, 0
      %p147 = por %p145, %p146
      %p148 = scmp.ne.s32.totalorder %s140, %s142
      %p149 = scmp.eq.s32.totalorder %s22, 3
      %p150 = por %p148, %p149
      %p151 = scmp.ne.s32.totalorder %s142, %s143
      %p152 = scmp.eq.s32.totalorder %s22, 0
      %p153 = por %p151, %p152
      %p154 = scmp.ne.s32.totalorder %s142, %s143
      %p155 = scmp.eq.s32.totalorder %s23, 3
      %p156 = por %p154, %p155
      %p158 = scmp.ne.s32.totalorder %s143, %s157
      %p159 = scmp.eq.s32.totalorder %s23, 0
      %p160 = por %p158, %p159
      %p161 = scmp.le.s32.totalorder 1, %s17
      %p162 = scmp.lt.s32.totalorder %s17, 5
      %p163 = pnand %p161, %p162
      %p164 = pneg %p163
      // Predicated region
      $region9: #{hybrid_convnet_forward.3} parent=5 // pred_check
        _
      $region10: #{hybrid_convnet_forward.3} parent=5 // pred_check_branch
        %166 = sbr.rel (%p163) target = $region12
      $region11: #{hybrid_convnet_forward.3} parent=5 // pred_region
        %s167 = ssub.s32 %s17, 1
        // Predicated region
        $region13: #{hybrid_convnet_forward.3} parent=11 // pred_check
          %p168 = pneg %p90
        $region14: #{hybrid_convnet_forward.3} parent=11 // pred_check_branch
          %170 = sbr.rel (%p168) target = $region16
        $region15: #{hybrid_convnet_forward.3} parent=11 // pred_region
          %s172 = ssub.s32 16, 16
          %173 = vsyncadd [#allocation7], %s172
          %s175 = sshll.u32 [#allocation6], 4
          %s176 = int_to_ptr.vmem [resolvable:$true] %s175
          %178 = dma.hbm_to_vmem [thread:$0]  %s2, 16, %s176, [#allocation7]
        $region16: #{hybrid_convnet_forward.3} parent=11 // pred_fallthru
          _
        // Predicated region
        $region17: #{hybrid_convnet_forward.3} parent=11 // pred_check
          %p179 = pneg %p111
        $region18: #{hybrid_convnet_forward.3} parent=11 // pred_check_branch
          %181 = sbr.rel (%p179) target = $region20
        $region19: #{hybrid_convnet_forward.3} parent=11 // pred_region
          %s183 = ssub.s32 2048, 2048
          %184 = vsyncadd [#allocation7], %s183
          %s185 = sshll.u32 [#allocation8], 4
          %s186 = int_to_ptr.vmem [resolvable:$true] %s185
          %191 = dma.hbm_to_vmem [thread:$0]  %s3, 2048, %s186, [#allocation7], 128, 128, 8
        $region20: #{hybrid_convnet_forward.3} parent=11 // pred_fallthru
          _
        // Predicated region
        $region21: #{hybrid_convnet_forward.3} parent=11 // pred_check
          %p192 = pneg %p132
        $region22: #{hybrid_convnet_forward.3} parent=11 // pred_check_branch
          %194 = sbr.rel (%p192) target = $region24
        $region23: #{hybrid_convnet_forward.3} parent=11 // pred_region
          %s196 = ssub.s32 16, 16
          %197 = vsyncadd [#allocation10], %s196
          %s199 = sshll.u32 [#allocation9], 4
          %s200 = int_to_ptr.vmem [resolvable:$true] %s199
          %202 = dma.hbm_to_vmem [thread:$0]  %s4, 16, %s200, [#allocation10]
        $region24: #{hybrid_convnet_forward.3} parent=11 // pred_fallthru
          _
      $region12: #{hybrid_convnet_forward.3} parent=5 // pred_fallthru
        _
      %p203 = scmp.lt.s32.totalorder %s17, 4
      // Predicated region
      $region25: #{hybrid_convnet_forward.3} parent=5 // pred_check
        %p204 = pneg %p203
      $region26: #{hybrid_convnet_forward.3} parent=5 // pred_check_branch
        %206 = sbr.rel (%p204) target = $region28
      $region27: #{hybrid_convnet_forward.3} parent=5 // pred_region
        // Predicated region
        $region29: #{hybrid_convnet_forward.3} parent=27 // pred_check
          %p207 = pneg %p37
        $region30: #{hybrid_convnet_forward.3} parent=27 // pred_check_branch
          %209 = sbr.rel (%p207) target = $region32
        $region31: #{hybrid_convnet_forward.3} parent=27 // pred_region
          %s210 = smul.u32 16, %s17
          %p211 = scmp.lt.s32.totalorder %s210, 63
          %s212 = scalar_select %p211, %s210, 63
          %s213 = scalar_lea.vmem %s0, %s212
          %s214 = smul.u32 16, %s17
        $region32: #{hybrid_convnet_forward.3} parent=27 // pred_fallthru
          _
        // Predicated region
        $region33: #{hybrid_convnet_forward.3} parent=27 // pred_check
          %p215 = pneg %p63
        $region34: #{hybrid_convnet_forward.3} parent=27 // pred_check_branch
          %217 = sbr.rel (%p215) target = $region36
        $region35: #{hybrid_convnet_forward.3} parent=27 // pred_region
          %s218 = sand.u32 %s53, 1
          %s219 = scalar_lea.sflag [#allocation4], %s218
          %s220 = sand.u32 %s53, 1
          %s221 = smul.addr %s220, 1024
          %s222 = scalar_lea.vmem [#allocation3], %s221
          %s223 = smul.u32 256, %s17
          %s225 = ssub.s32 16384, 16384
          %226 = vsyncadd %s219, %s225
          %s227 = smul.addr %s223, 64
          %s228 = scalar_lea.hbm %s1, %s227
          %s229 = sshll.u32 %s222, 4
          %s230 = int_to_ptr.vmem [resolvable:$true] %s229
          %235 = dma.hbm_to_vmem [thread:$0]  %s228, 16384, %s230, %s219, 64, 64, 4
        $region36: #{hybrid_convnet_forward.3} parent=27 // pred_fallthru
          _
      $region28: #{hybrid_convnet_forward.3} parent=5 // pred_fallthru
        _
      %p236 = scmp.le.s32.totalorder 1, %s17
      %p237 = scmp.lt.s32.totalorder %s17, 5
      %p238 = pnand %p236, %p237
      %p239 = pneg %p238
      // Predicated region
      $region37: #{hybrid_convnet_forward.3} parent=5 // pred_check
        _
      $region38: #{hybrid_convnet_forward.3} parent=5 // pred_check_branch
        %241 = sbr.rel (%p238) target = $region40
      $region39: #{hybrid_convnet_forward.3} parent=5 // pred_region
        %s242 = ssub.s32 %s17, 1
        %s243 = sand.u32 %s56, 1
        %s244 = scalar_lea.sflag [#allocation4], %s243
        %s245 = sand.u32 %s56, 1
        %s246 = smul.addr %s245, 1024
        %s247 = scalar_lea.vmem [#allocation3], %s246
        // Predicated region
        $region41: #{hybrid_convnet_forward.3} parent=39 // pred_check
          %p248 = pneg %p69
        $region42: #{hybrid_convnet_forward.3} parent=39 // pred_check_branch
          %250 = sbr.rel (%p248) target = $region44
        $region43: #{hybrid_convnet_forward.3} parent=39 // pred_region
          %251 = dma.done %s244, 16384
        $region44: #{hybrid_convnet_forward.3} parent=39 // pred_fallthru
          _
        // Predicated region
        $region45: #{hybrid_convnet_forward.3} parent=39 // pred_check
          %p252 = pneg %p90
        $region46: #{hybrid_convnet_forward.3} parent=39 // pred_check_branch
          %254 = sbr.rel (%p252) target = $region48
        $region47: #{hybrid_convnet_forward.3} parent=39 // pred_region
          %255 = dma.done [#allocation7], 16
        $region48: #{hybrid_convnet_forward.3} parent=39 // pred_fallthru
          _
        // Predicated region
        $region49: #{hybrid_convnet_forward.3} parent=39 // pred_check
          %p256 = pneg %p111
        $region50: #{hybrid_convnet_forward.3} parent=39 // pred_check_branch
          %258 = sbr.rel (%p256) target = $region52
        $region51: #{hybrid_convnet_forward.3} parent=39 // pred_region
          %259 = dma.done [#allocation7], 2048
        $region52: #{hybrid_convnet_forward.3} parent=39 // pred_fallthru
          _
        // Predicated region
        $region53: #{hybrid_convnet_forward.3} parent=39 // pred_check
          %p260 = pneg %p132
        $region54: #{hybrid_convnet_forward.3} parent=39 // pred_check_branch
          %262 = sbr.rel (%p260) target = $region56
        $region55: #{hybrid_convnet_forward.3} parent=39 // pred_region
          %263 = dma.done [#allocation10], 16
        $region56: #{hybrid_convnet_forward.3} parent=39 // pred_fallthru
          _
        %s264 = smul.u32 16, %s22
        %p265 = scmp.lt.s32.totalorder %s264, 63
        %s266 = scalar_select %p265, %s264, 63
        %s267 = scalar_lea.vmem %s0, %s266
        %p268 = pneg %p43
        %p269 = pneg %p40
        %s270 = sand.u32 %s56, 1
        %s271 = scalar_lea.sflag [#allocation4], %s270
        %s272 = sand.u32 %s56, 1
        %s273 = smul.addr %s272, 1024
        %s274 = scalar_lea.vmem [#allocation3], %s273
        %p275 = pneg %p69
        %p276 = pneg %p66
        %p277 = pneg %p90
        %p278 = pneg %p87
        %p279 = pneg %p111
        %p280 = pneg %p108
        %p281 = pneg %p132
        %p282 = pneg %p129
        %p283 = pneg %p153
        %p284 = pneg %p150
        %s285 = smul.u32 16, %s22
        %p286 = scmp.lt.s32.totalorder %s285, 63
        %s287 = scalar_select %p286, %s285, 63
        %s288 = scalar_lea.vmem %s0, %s287
        %s289 = smul.u32 16, %s22
        %s290 = smul.u32 256, %s22
        %p292 = scmp.eq.s32.totalorder %s22, 0
        // Predicated region
        $region57: #{hybrid_convnet_forward.3} parent=39 // pred_check
          %p293 = pneg %p292
        $region58: #{hybrid_convnet_forward.3} parent=39 // pred_check_branch
          %295 = sbr.rel (%p293) target = $region60
        $region59: #{hybrid_convnet_forward.3} parent=39 // pred_region
          %296 = vst [vmem:[#allocation2] sm:$0x1] 0.0
        $region60: #{hybrid_convnet_forward.3} parent=39 // pred_fallthru
          _
        %v297 = vld [vmem:[%s288] sm:$0xff]
        %v298 = vld [vmem:[%s288 + $0x8] sm:$0xff]
        %v301 = vlaneseq
        %v302 = vshrl.u32 %v301, 7
        %v303 = vsub.s32 0, %v302
        %v304 = vrot.slane %v297, %v303
        %v305 = vlaneseq
        %v306 = vshrl.u32 %v305, 7
        %v307 = vsub.s32 1, %v306
        %v308 = vrot.slane %v297, %v307
        %v309 = vlaneseq
        %v310 = vshrl.u32 %v309, 7
        %v311 = vsub.s32 2, %v310
        %v312 = vrot.slane %v297, %v311
        %v313 = vlaneseq
        %v314 = vshrl.u32 %v313, 7
        %v315 = vsub.s32 3, %v314
        %v316 = vrot.slane %v297, %v315
        %v317 = vlaneseq
        %v318 = vshrl.u32 %v317, 7
        %v319 = vsub.s32 4, %v318
        %v320 = vrot.slane %v297, %v319
        %v321 = vlaneseq
        %v322 = vshrl.u32 %v321, 7
        %v323 = vsub.s32 5, %v322
        %v324 = vrot.slane %v297, %v323
        %v325 = vlaneseq
        %v326 = vshrl.u32 %v325, 7
        %v327 = vsub.s32 6, %v326
        %v328 = vrot.slane %v297, %v327
        %v329 = vlaneseq
        %v330 = vshrl.u32 %v329, 7
        %v331 = vsub.s32 7, %v330
        %v332 = vrot.slane %v297, %v331
        %v333 = vlaneseq
        %v334 = vshrl.u32 %v333, 7
        %v335 = vsub.s32 0, %v334
        %v336 = vrot.slane %v298, %v335
        %v337 = vlaneseq
        %v338 = vshrl.u32 %v337, 7
        %v339 = vsub.s32 1, %v338
        %v340 = vrot.slane %v298, %v339
        %v341 = vlaneseq
        %v342 = vshrl.u32 %v341, 7
        %v343 = vsub.s32 2, %v342
        %v344 = vrot.slane %v298, %v343
        %v345 = vlaneseq
        %v346 = vshrl.u32 %v345, 7
        %v347 = vsub.s32 3, %v346
        %v348 = vrot.slane %v298, %v347
        %v349 = vlaneseq
        %v350 = vshrl.u32 %v349, 7
        %v351 = vsub.s32 4, %v350
        %v352 = vrot.slane %v298, %v351
        %v353 = vlaneseq
        %v354 = vshrl.u32 %v353, 7
        %v355 = vsub.s32 5, %v354
        %v356 = vrot.slane %v298, %v355
        %v357 = vlaneseq
        %v358 = vshrl.u32 %v357, 7
        %v359 = vsub.s32 6, %v358
        %v360 = vrot.slane %v298, %v359
        %v361 = vlaneseq
        %v362 = vshrl.u32 %v361, 7
        %v363 = vsub.s32 7, %v362
        %v364 = vrot.slane %v298, %v363
        %v381 = vpack.c.bf16 %v304, %v304
        %v382 = vpack.c.bf16 %v308, %v308
        %v383 = vpack.c.bf16 %v312, %v312
        %v384 = vpack.c.bf16 %v316, %v316
        %v385 = vpack.c.bf16 %v320, %v320
        %v386 = vpack.c.bf16 %v324, %v324
        %v387 = vpack.c.bf16 %v328, %v328
        %v388 = vpack.c.bf16 %v332, %v332
        %v389 = vpack.c.bf16 %v336, %v336
        %v390 = vpack.c.bf16 %v340, %v340
        %v391 = vpack.c.bf16 %v344, %v344
        %v392 = vpack.c.bf16 %v348, %v348
        %v393 = vpack.c.bf16 %v352, %v352
        %v394 = vpack.c.bf16 %v356, %v356
        %v395 = vpack.c.bf16 %v360, %v360
        %v396 = vpack.c.bf16 %v364, %v364
        %v397 = vld [vmem:[#allocation2] sm:$0x1]
        %v398 = vld [vmem:[%s247] sm:$0xf]
        %v399 = vld [vmem:[%s247 + $0x4] sm:$0xf]
        %v400 = vld [vmem:[%s247 + $0x8] sm:$0xf]
        %v401 = vld [vmem:[%s247 + $0xc] sm:$0xf]
        %v402 = vld [vmem:[%s247 + $0x10] sm:$0xf]
        %v403 = vld [vmem:[%s247 + $0x14] sm:$0xf]
        %v404 = vld [vmem:[%s247 + $0x18] sm:$0xf]
        %v405 = vld [vmem:[%s247 + $0x1c] sm:$0xf]
        %v406 = vld [vmem:[%s247 + $0x20] sm:$0xf]
        %v407 = vld [vmem:[%s247 + $0x24] sm:$0xf]
        %v408 = vld [vmem:[%s247 + $0x28] sm:$0xf]
        %v409 = vld [vmem:[%s247 + $0x2c] sm:$0xf]
        %v410 = vld [vmem:[%s247 + $0x30] sm:$0xf]
        %v411 = vld [vmem:[%s247 + $0x34] sm:$0xf]
        %v412 = vld [vmem:[%s247 + $0x38] sm:$0xf]
        %v413 = vld [vmem:[%s247 + $0x3c] sm:$0xf]
        %v414 = vld [vmem:[%s247 + $0x40] sm:$0xf]
        %v415 = vld [vmem:[%s247 + $0x44] sm:$0xf]
        %v416 = vld [vmem:[%s247 + $0x48] sm:$0xf]
        %v417 = vld [vmem:[%s247 + $0x4c] sm:$0xf]
        %v418 = vld [vmem:[%s247 + $0x50] sm:$0xf]
        %v419 = vld [vmem:[%s247 + $0x54] sm:$0xf]
        %v420 = vld [vmem:[%s247 + $0x58] sm:$0xf]
        %v421 = vld [vmem:[%s247 + $0x5c] sm:$0xf]
        %v422 = vld [vmem:[%s247 + $0x60] sm:$0xf]
        %v423 = vld [vmem:[%s247 + $0x64] sm:$0xf]
        %v424 = vld [vmem:[%s247 + $0x68] sm:$0xf]
        %v425 = vld [vmem:[%s247 + $0x6c] sm:$0xf]
        %v426 = vld [vmem:[%s247 + $0x70] sm:$0xf]
        %v427 = vld [vmem:[%s247 + $0x74] sm:$0xf]
        %v428 = vld [vmem:[%s247 + $0x78] sm:$0xf]
        %v429 = vld [vmem:[%s247 + $0x7c] sm:$0xf]
        %v430 = vld [vmem:[%s247 + $0x80] sm:$0xf]
        %v431 = vld [vmem:[%s247 + $0x84] sm:$0xf]
        %v432 = vld [vmem:[%s247 + $0x88] sm:$0xf]
        %v433 = vld [vmem:[%s247 + $0x8c] sm:$0xf]
        %v434 = vld [vmem:[%s247 + $0x90] sm:$0xf]
        %v435 = vld [vmem:[%s247 + $0x94] sm:$0xf]
        %v436 = vld [vmem:[%s247 + $0x98] sm:$0xf]
        %v437 = vld [vmem:[%s247 + $0x9c] sm:$0xf]
        %v438 = vld [vmem:[%s247 + $0xa0] sm:$0xf]
        %v439 = vld [vmem:[%s247 + $0xa4] sm:$0xf]
        %v440 = vld [vmem:[%s247 + $0xa8] sm:$0xf]
        %v441 = vld [vmem:[%s247 + $0xac] sm:$0xf]
        %v442 = vld [vmem:[%s247 + $0xb0] sm:$0xf]
        %v443 = vld [vmem:[%s247 + $0xb4] sm:$0xf]
        %v444 = vld [vmem:[%s247 + $0xb8] sm:$0xf]
        %v445 = vld [vmem:[%s247 + $0xbc] sm:$0xf]
        %v446 = vld [vmem:[%s247 + $0xc0] sm:$0xf]
        %v447 = vld [vmem:[%s247 + $0xc4] sm:$0xf]
        %v448 = vld [vmem:[%s247 + $0xc8] sm:$0xf]
        %v449 = vld [vmem:[%s247 + $0xcc] sm:$0xf]
        %v450 = vld [vmem:[%s247 + $0xd0] sm:$0xf]
        %v451 = vld [vmem:[%s247 + $0xd4] sm:$0xf]
        %v452 = vld [vmem:[%s247 + $0xd8] sm:$0xf]
        %v453 = vld [vmem:[%s247 + $0xdc] sm:$0xf]
        %v454 = vld [vmem:[%s247 + $0xe0] sm:$0xf]
        %v455 = vld [vmem:[%s247 + $0xe4] sm:$0xf]
        %v456 = vld [vmem:[%s247 + $0xe8] sm:$0xf]
        %v457 = vld [vmem:[%s247 + $0xec] sm:$0xf]
        %v458 = vld [vmem:[%s247 + $0xf0] sm:$0xf]
        %v459 = vld [vmem:[%s247 + $0xf4] sm:$0xf]
        %v460 = vld [vmem:[%s247 + $0xf8] sm:$0xf]
        %v461 = vld [vmem:[%s247 + $0xfc] sm:$0xf]
        %v462 = vld [vmem:[%s247 + $0x100] sm:$0xf]
        %v463 = vld [vmem:[%s247 + $0x104] sm:$0xf]
        %v464 = vld [vmem:[%s247 + $0x108] sm:$0xf]
        %v465 = vld [vmem:[%s247 + $0x10c] sm:$0xf]
        %v466 = vld [vmem:[%s247 + $0x110] sm:$0xf]
        %v467 = vld [vmem:[%s247 + $0x114] sm:$0xf]
        %v468 = vld [vmem:[%s247 + $0x118] sm:$0xf]
        %v469 = vld [vmem:[%s247 + $0x11c] sm:$0xf]
        %v470 = vld [vmem:[%s247 + $0x120] sm:$0xf]
        %v471 = vld [vmem:[%s247 + $0x124] sm:$0xf]
        %v472 = vld [vmem:[%s247 + $0x128] sm:$0xf]
        %v473 = vld [vmem:[%s247 + $0x12c] sm:$0xf]
        %v474 = vld [vmem:[%s247 + $0x130] sm:$0xf]
        %v475 = vld [vmem:[%s247 + $0x134] sm:$0xf]
        %v476 = vld [vmem:[%s247 + $0x138] sm:$0xf]
        %v477 = vld [vmem:[%s247 + $0x13c] sm:$0xf]
        %v478 = vld [vmem:[%s247 + $0x140] sm:$0xf]
        %v479 = vld [vmem:[%s247 + $0x144] sm:$0xf]
        %v480 = vld [vmem:[%s247 + $0x148] sm:$0xf]
        %v481 = vld [vmem:[%s247 + $0x14c] sm:$0xf]
        %v482 = vld [vmem:[%s247 + $0x150] sm:$0xf]
        %v483 = vld [vmem:[%s247 + $0x154] sm:$0xf]
        %v484 = vld [vmem:[%s247 + $0x158] sm:$0xf]
        %v485 = vld [vmem:[%s247 + $0x15c] sm:$0xf]
        %v486 = vld [vmem:[%s247 + $0x160] sm:$0xf]
        %v487 = vld [vmem:[%s247 + $0x164] sm:$0xf]
        %v488 = vld [vmem:[%s247 + $0x168] sm:$0xf]
        %v489 = vld [vmem:[%s247 + $0x16c] sm:$0xf]
        %v490 = vld [vmem:[%s247 + $0x170] sm:$0xf]
        %v491 = vld [vmem:[%s247 + $0x174] sm:$0xf]
        %v492 = vld [vmem:[%s247 + $0x178] sm:$0xf]
        %v493 = vld [vmem:[%s247 + $0x17c] sm:$0xf]
        %v494 = vld [vmem:[%s247 + $0x180] sm:$0xf]
        %v495 = vld [vmem:[%s247 + $0x184] sm:$0xf]
        %v496 = vld [vmem:[%s247 + $0x188] sm:$0xf]
        %v497 = vld [vmem:[%s247 + $0x18c] sm:$0xf]
        %v498 = vld [vmem:[%s247 + $0x190] sm:$0xf]
        %v499 = vld [vmem:[%s247 + $0x194] sm:$0xf]
        %v500 = vld [vmem:[%s247 + $0x198] sm:$0xf]
        %v501 = vld [vmem:[%s247 + $0x19c] sm:$0xf]
        %v502 = vld [vmem:[%s247 + $0x1a0] sm:$0xf]
        %v503 = vld [vmem:[%s247 + $0x1a4] sm:$0xf]
        %v504 = vld [vmem:[%s247 + $0x1a8] sm:$0xf]
        %v505 = vld [vmem:[%s247 + $0x1ac] sm:$0xf]
        %v506 = vld [vmem:[%s247 + $0x1b0] sm:$0xf]
        %v507 = vld [vmem:[%s247 + $0x1b4] sm:$0xf]
        %v508 = vld [vmem:[%s247 + $0x1b8] sm:$0xf]
        %v509 = vld [vmem:[%s247 + $0x1bc] sm:$0xf]
        %v510 = vld [vmem:[%s247 + $0x1c0] sm:$0xf]
        %v511 = vld [vmem:[%s247 + $0x1c4] sm:$0xf]
        %v512 = vld [vmem:[%s247 + $0x1c8] sm:$0xf]
        %v513 = vld [vmem:[%s247 + $0x1cc] sm:$0xf]
        %v514 = vld [vmem:[%s247 + $0x1d0] sm:$0xf]
        %v515 = vld [vmem:[%s247 + $0x1d4] sm:$0xf]
        %v516 = vld [vmem:[%s247 + $0x1d8] sm:$0xf]
        %v517 = vld [vmem:[%s247 + $0x1dc] sm:$0xf]
        %v518 = vld [vmem:[%s247 + $0x1e0] sm:$0xf]
        %v519 = vld [vmem:[%s247 + $0x1e4] sm:$0xf]
        %v520 = vld [vmem:[%s247 + $0x1e8] sm:$0xf]
        %v521 = vld [vmem:[%s247 + $0x1ec] sm:$0xf]
        %v522 = vld [vmem:[%s247 + $0x1f0] sm:$0xf]
        %v523 = vld [vmem:[%s247 + $0x1f4] sm:$0xf]
        %v524 = vld [vmem:[%s247 + $0x1f8] sm:$0xf]
        %v525 = vld [vmem:[%s247 + $0x1fc] sm:$0xf]
        %v526 = vld [vmem:[%s247 + $0x200] sm:$0xf]
        %v527 = vld [vmem:[%s247 + $0x204] sm:$0xf]
        %v528 = vld [vmem:[%s247 + $0x208] sm:$0xf]
        %v529 = vld [vmem:[%s247 + $0x20c] sm:$0xf]
        %v530 = vld [vmem:[%s247 + $0x210] sm:$0xf]
        %v531 = vld [vmem:[%s247 + $0x214] sm:$0xf]
        %v532 = vld [vmem:[%s247 + $0x218] sm:$0xf]
        %v533 = vld [vmem:[%s247 + $0x21c] sm:$0xf]
        %v534 = vld [vmem:[%s247 + $0x220] sm:$0xf]
        %v535 = vld [vmem:[%s247 + $0x224] sm:$0xf]
        %v536 = vld [vmem:[%s247 + $0x228] sm:$0xf]
        %v537 = vld [vmem:[%s247 + $0x22c] sm:$0xf]
        %v538 = vld [vmem:[%s247 + $0x230] sm:$0xf]
        %v539 = vld [vmem:[%s247 + $0x234] sm:$0xf]
        %v540 = vld [vmem:[%s247 + $0x238] sm:$0xf]
        %v541 = vld [vmem:[%s247 + $0x23c] sm:$0xf]
        %v542 = vld [vmem:[%s247 + $0x240] sm:$0xf]
        %v543 = vld [vmem:[%s247 + $0x244] sm:$0xf]
        %v544 = vld [vmem:[%s247 + $0x248] sm:$0xf]
        %v545 = vld [vmem:[%s247 + $0x24c] sm:$0xf]
        %v546 = vld [vmem:[%s247 + $0x250] sm:$0xf]
        %v547 = vld [vmem:[%s247 + $0x254] sm:$0xf]
        %v548 = vld [vmem:[%s247 + $0x258] sm:$0xf]
        %v549 = vld [vmem:[%s247 + $0x25c] sm:$0xf]
        %v550 = vld [vmem:[%s247 + $0x260] sm:$0xf]
        %v551 = vld [vmem:[%s247 + $0x264] sm:$0xf]
        %v552 = vld [vmem:[%s247 + $0x268] sm:$0xf]
        %v553 = vld [vmem:[%s247 + $0x26c] sm:$0xf]
        %v554 = vld [vmem:[%s247 + $0x270] sm:$0xf]
        %v555 = vld [vmem:[%s247 + $0x274] sm:$0xf]
        %v556 = vld [vmem:[%s247 + $0x278] sm:$0xf]
        %v557 = vld [vmem:[%s247 + $0x27c] sm:$0xf]
        %v558 = vld [vmem:[%s247 + $0x280] sm:$0xf]
        %v559 = vld [vmem:[%s247 + $0x284] sm:$0xf]
        %v560 = vld [vmem:[%s247 + $0x288] sm:$0xf]
        %v561 = vld [vmem:[%s247 + $0x28c] sm:$0xf]
        %v562 = vld [vmem:[%s247 + $0x290] sm:$0xf]
        %v563 = vld [vmem:[%s247 + $0x294] sm:$0xf]
        %v564 = vld [vmem:[%s247 + $0x298] sm:$0xf]
        %v565 = vld [vmem:[%s247 + $0x29c] sm:$0xf]
        %v566 = vld [vmem:[%s247 + $0x2a0] sm:$0xf]
        %v567 = vld [vmem:[%s247 + $0x2a4] sm:$0xf]
        %v568 = vld [vmem:[%s247 + $0x2a8] sm:$0xf]
        %v569 = vld [vmem:[%s247 + $0x2ac] sm:$0xf]
        %v570 = vld [vmem:[%s247 + $0x2b0] sm:$0xf]
        %v571 = vld [vmem:[%s247 + $0x2b4] sm:$0xf]
        %v572 = vld [vmem:[%s247 + $0x2b8] sm:$0xf]
        %v573 = vld [vmem:[%s247 + $0x2bc] sm:$0xf]
        %v574 = vld [vmem:[%s247 + $0x2c0] sm:$0xf]
        %v575 = vld [vmem:[%s247 + $0x2c4] sm:$0xf]
        %v576 = vld [vmem:[%s247 + $0x2c8] sm:$0xf]
        %v577 = vld [vmem:[%s247 + $0x2cc] sm:$0xf]
        %v578 = vld [vmem:[%s247 + $0x2d0] sm:$0xf]
        %v579 = vld [vmem:[%s247 + $0x2d4] sm:$0xf]
        %v580 = vld [vmem:[%s247 + $0x2d8] sm:$0xf]
        %v581 = vld [vmem:[%s247 + $0x2dc] sm:$0xf]
        %v582 = vld [vmem:[%s247 + $0x2e0] sm:$0xf]
        %v583 = vld [vmem:[%s247 + $0x2e4] sm:$0xf]
        %v584 = vld [vmem:[%s247 + $0x2e8] sm:$0xf]
        %v585 = vld [vmem:[%s247 + $0x2ec] sm:$0xf]
        %v586 = vld [vmem:[%s247 + $0x2f0] sm:$0xf]
        %v587 = vld [vmem:[%s247 + $0x2f4] sm:$0xf]
        %v588 = vld [vmem:[%s247 + $0x2f8] sm:$0xf]
        %v589 = vld [vmem:[%s247 + $0x2fc] sm:$0xf]
        %v590 = vld [vmem:[%s247 + $0x300] sm:$0xf]
        %v591 = vld [vmem:[%s247 + $0x304] sm:$0xf]
        %v592 = vld [vmem:[%s247 + $0x308] sm:$0xf]
        %v593 = vld [vmem:[%s247 + $0x30c] sm:$0xf]
        %v594 = vld [vmem:[%s247 + $0x310] sm:$0xf]
        %v595 = vld [vmem:[%s247 + $0x314] sm:$0xf]
        %v596 = vld [vmem:[%s247 + $0x318] sm:$0xf]
        %v597 = vld [vmem:[%s247 + $0x31c] sm:$0xf]
        %v598 = vld [vmem:[%s247 + $0x320] sm:$0xf]
        %v599 = vld [vmem:[%s247 + $0x324] sm:$0xf]
        %v600 = vld [vmem:[%s247 + $0x328] sm:$0xf]
        %v601 = vld [vmem:[%s247 + $0x32c] sm:$0xf]
        %v602 = vld [vmem:[%s247 + $0x330] sm:$0xf]
        %v603 = vld [vmem:[%s247 + $0x334] sm:$0xf]
        %v604 = vld [vmem:[%s247 + $0x338] sm:$0xf]
        %v605 = vld [vmem:[%s247 + $0x33c] sm:$0xf]
        %v606 = vld [vmem:[%s247 + $0x340] sm:$0xf]
        %v607 = vld [vmem:[%s247 + $0x344] sm:$0xf]
        %v608 = vld [vmem:[%s247 + $0x348] sm:$0xf]
        %v609 = vld [vmem:[%s247 + $0x34c] sm:$0xf]
        %v610 = vld [vmem:[%s247 + $0x350] sm:$0xf]
        %v611 = vld [vmem:[%s247 + $0x354] sm:$0xf]
        %v612 = vld [vmem:[%s247 + $0x358] sm:$0xf]
        %v613 = vld [vmem:[%s247 + $0x35c] sm:$0xf]
        %v614 = vld [vmem:[%s247 + $0x360] sm:$0xf]
        %v615 = vld [vmem:[%s247 + $0x364] sm:$0xf]
        %v616 = vld [vmem:[%s247 + $0x368] sm:$0xf]
        %v617 = vld [vmem:[%s247 + $0x36c] sm:$0xf]
        %v618 = vld [vmem:[%s247 + $0x370] sm:$0xf]
        %v619 = vld [vmem:[%s247 + $0x374] sm:$0xf]
        %v620 = vld [vmem:[%s247 + $0x378] sm:$0xf]
        %v621 = vld [vmem:[%s247 + $0x37c] sm:$0xf]
        %v622 = vld [vmem:[%s247 + $0x380] sm:$0xf]
        %v623 = vld [vmem:[%s247 + $0x384] sm:$0xf]
        %v624 = vld [vmem:[%s247 + $0x388] sm:$0xf]
        %v625 = vld [vmem:[%s247 + $0x38c] sm:$0xf]
        %v626 = vld [vmem:[%s247 + $0x390] sm:$0xf]
        %v627 = vld [vmem:[%s247 + $0x394] sm:$0xf]
        %v628 = vld [vmem:[%s247 + $0x398] sm:$0xf]
        %v629 = vld [vmem:[%s247 + $0x39c] sm:$0xf]
        %v630 = vld [vmem:[%s247 + $0x3a0] sm:$0xf]
        %v631 = vld [vmem:[%s247 + $0x3a4] sm:$0xf]
        %v632 = vld [vmem:[%s247 + $0x3a8] sm:$0xf]
        %v633 = vld [vmem:[%s247 + $0x3ac] sm:$0xf]
        %v634 = vld [vmem:[%s247 + $0x3b0] sm:$0xf]
        %v635 = vld [vmem:[%s247 + $0x3b4] sm:$0xf]
        %v636 = vld [vmem:[%s247 + $0x3b8] sm:$0xf]
        %v637 = vld [vmem:[%s247 + $0x3bc] sm:$0xf]
        %v638 = vld [vmem:[%s247 + $0x3c0] sm:$0xf]
        %v639 = vld [vmem:[%s247 + $0x3c4] sm:$0xf]
        %v640 = vld [vmem:[%s247 + $0x3c8] sm:$0xf]
        %v641 = vld [vmem:[%s247 + $0x3cc] sm:$0xf]
        %v642 = vld [vmem:[%s247 + $0x3d0] sm:$0xf]
        %v643 = vld [vmem:[%s247 + $0x3d4] sm:$0xf]
        %v644 = vld [vmem:[%s247 + $0x3d8] sm:$0xf]
        %v645 = vld [vmem:[%s247 + $0x3dc] sm:$0xf]
        %v646 = vld [vmem:[%s247 + $0x3e0] sm:$0xf]
        %v647 = vld [vmem:[%s247 + $0x3e4] sm:$0xf]
        %v648 = vld [vmem:[%s247 + $0x3e8] sm:$0xf]
        %v649 = vld [vmem:[%s247 + $0x3ec] sm:$0xf]
        %v650 = vld [vmem:[%s247 + $0x3f0] sm:$0xf]
        %v651 = vld [vmem:[%s247 + $0x3f4] sm:$0xf]
        %v652 = vld [vmem:[%s247 + $0x3f8] sm:$0xf]
        %v653 = vld [vmem:[%s247 + $0x3fc] sm:$0xf]
        %v910 = vunpack.c.l.b16 %v398
        %v911 = vunpack.c.l.b16 %v399
        %v912 = vunpack.c.l.b16 %v400
        %v913 = vunpack.c.l.b16 %v401
        %v914 = vunpack.c.l.b16 %v402
        %v915 = vunpack.c.l.b16 %v403
        %v916 = vunpack.c.l.b16 %v404
        %v917 = vunpack.c.l.b16 %v405
        %v918 = vunpack.c.l.b16 %v406
        %v919 = vunpack.c.l.b16 %v407
        %v920 = vunpack.c.l.b16 %v408
        %v921 = vunpack.c.l.b16 %v409
        %v922 = vunpack.c.l.b16 %v410
        %v923 = vunpack.c.l.b16 %v411
        %v924 = vunpack.c.l.b16 %v412
        %v925 = vunpack.c.l.b16 %v413
        %v926 = vunpack.c.l.b16 %v414
        %v927 = vunpack.c.l.b16 %v415
        %v928 = vunpack.c.l.b16 %v416
        %v929 = vunpack.c.l.b16 %v417
        %v930 = vunpack.c.l.b16 %v418
        %v931 = vunpack.c.l.b16 %v419
        %v932 = vunpack.c.l.b16 %v420
        %v933 = vunpack.c.l.b16 %v421
        %v934 = vunpack.c.l.b16 %v422
        %v935 = vunpack.c.l.b16 %v423
        %v936 = vunpack.c.l.b16 %v424
        %v937 = vunpack.c.l.b16 %v425
        %v938 = vunpack.c.l.b16 %v426
        %v939 = vunpack.c.l.b16 %v427
        %v940 = vunpack.c.l.b16 %v428
        %v941 = vunpack.c.l.b16 %v429
        %v942 = vunpack.c.l.b16 %v430
        %v943 = vunpack.c.l.b16 %v431
        %v944 = vunpack.c.l.b16 %v432
        %v945 = vunpack.c.l.b16 %v433
        %v946 = vunpack.c.l.b16 %v434
        %v947 = vunpack.c.l.b16 %v435
        %v948 = vunpack.c.l.b16 %v436
        %v949 = vunpack.c.l.b16 %v437
        %v950 = vunpack.c.l.b16 %v438
        %v951 = vunpack.c.l.b16 %v439
        %v952 = vunpack.c.l.b16 %v440
        %v953 = vunpack.c.l.b16 %v441
        %v954 = vunpack.c.l.b16 %v442
        %v955 = vunpack.c.l.b16 %v443
        %v956 = vunpack.c.l.b16 %v444
        %v957 = vunpack.c.l.b16 %v445
        %v958 = vunpack.c.l.b16 %v446
        %v959 = vunpack.c.l.b16 %v447
        %v960 = vunpack.c.l.b16 %v448
        %v961 = vunpack.c.l.b16 %v449
        %v962 = vunpack.c.l.b16 %v450
        %v963 = vunpack.c.l.b16 %v451
        %v964 = vunpack.c.l.b16 %v452
        %v965 = vunpack.c.l.b16 %v453
        %v966 = vunpack.c.l.b16 %v454
        %v967 = vunpack.c.l.b16 %v455
        %v968 = vunpack.c.l.b16 %v456
        %v969 = vunpack.c.l.b16 %v457
        %v970 = vunpack.c.l.b16 %v458
        %v971 = vunpack.c.l.b16 %v459
        %v972 = vunpack.c.l.b16 %v460
        %v973 = vunpack.c.l.b16 %v461
        %v974 = vunpack.c.l.b16 %v462
        %v975 = vunpack.c.l.b16 %v463
        %v976 = vunpack.c.l.b16 %v464
        %v977 = vunpack.c.l.b16 %v465
        %v978 = vunpack.c.l.b16 %v466
        %v979 = vunpack.c.l.b16 %v467
        %v980 = vunpack.c.l.b16 %v468
        %v981 = vunpack.c.l.b16 %v469
        %v982 = vunpack.c.l.b16 %v470
        %v983 = vunpack.c.l.b16 %v471
        %v984 = vunpack.c.l.b16 %v472
        %v985 = vunpack.c.l.b16 %v473
        %v986 = vunpack.c.l.b16 %v474
        %v987 = vunpack.c.l.b16 %v475
        %v988 = vunpack.c.l.b16 %v476
        %v989 = vunpack.c.l.b16 %v477
        %v990 = vunpack.c.l.b16 %v478
        %v991 = vunpack.c.l.b16 %v479
        %v992 = vunpack.c.l.b16 %v480
        %v993 = vunpack.c.l.b16 %v481
        %v994 = vunpack.c.l.b16 %v482
        %v995 = vunpack.c.l.b16 %v483
        %v996 = vunpack.c.l.b16 %v484
        %v997 = vunpack.c.l.b16 %v485
        %v998 = vunpack.c.l.b16 %v486
        %v999 = vunpack.c.l.b16 %v487
        %v1000 = vunpack.c.l.b16 %v488
        %v1001 = vunpack.c.l.b16 %v489
        %v1002 = vunpack.c.l.b16 %v490
        %v1003 = vunpack.c.l.b16 %v491
        %v1004 = vunpack.c.l.b16 %v492
        %v1005 = vunpack.c.l.b16 %v493
        %v1006 = vunpack.c.l.b16 %v494
        %v1007 = vunpack.c.l.b16 %v495
        %v1008 = vunpack.c.l.b16 %v496
        %v1009 = vunpack.c.l.b16 %v497
        %v1010 = vunpack.c.l.b16 %v498
        %v1011 = vunpack.c.l.b16 %v499
        %v1012 = vunpack.c.l.b16 %v500
        %v1013 = vunpack.c.l.b16 %v501
        %v1014 = vunpack.c.l.b16 %v502
        %v1015 = vunpack.c.l.b16 %v503
        %v1016 = vunpack.c.l.b16 %v504
        %v1017 = vunpack.c.l.b16 %v505
        %v1018 = vunpack.c.l.b16 %v506
        %v1019 = vunpack.c.l.b16 %v507
        %v1020 = vunpack.c.l.b16 %v508
        %v1021 = vunpack.c.l.b16 %v509
        %v1022 = vunpack.c.l.b16 %v510
        %v1023 = vunpack.c.l.b16 %v511
        %v1024 = vunpack.c.l.b16 %v512
        %v1025 = vunpack.c.l.b16 %v513
        %v1026 = vunpack.c.l.b16 %v514
        %v1027 = vunpack.c.l.b16 %v515
        %v1028 = vunpack.c.l.b16 %v516
        %v1029 = vunpack.c.l.b16 %v517
        %v1030 = vunpack.c.l.b16 %v518
        %v1031 = vunpack.c.l.b16 %v519
        %v1032 = vunpack.c.l.b16 %v520
        %v1033 = vunpack.c.l.b16 %v521
        %v1034 = vunpack.c.l.b16 %v522
        %v1035 = vunpack.c.l.b16 %v523
        %v1036 = vunpack.c.l.b16 %v524
        %v1037 = vunpack.c.l.b16 %v525
        %v1038 = vunpack.c.l.b16 %v526
        %v1039 = vunpack.c.l.b16 %v527
        %v1040 = vunpack.c.l.b16 %v528
        %v1041 = vunpack.c.l.b16 %v529
        %v1042 = vunpack.c.l.b16 %v530
        %v1043 = vunpack.c.l.b16 %v531
        %v1044 = vunpack.c.l.b16 %v532
        %v1045 = vunpack.c.l.b16 %v533
        %v1046 = vunpack.c.l.b16 %v534
        %v1047 = vunpack.c.l.b16 %v535
        %v1048 = vunpack.c.l.b16 %v536
        %v1049 = vunpack.c.l.b16 %v537
        %v1050 = vunpack.c.l.b16 %v538
        %v1051 = vunpack.c.l.b16 %v539
        %v1052 = vunpack.c.l.b16 %v540
        %v1053 = vunpack.c.l.b16 %v541
        %v1054 = vunpack.c.l.b16 %v542
        %v1055 = vunpack.c.l.b16 %v543
        %v1056 = vunpack.c.l.b16 %v544
        %v1057 = vunpack.c.l.b16 %v545
        %v1058 = vunpack.c.l.b16 %v546
        %v1059 = vunpack.c.l.b16 %v547
        %v1060 = vunpack.c.l.b16 %v548
        %v1061 = vunpack.c.l.b16 %v549
        %v1062 = vunpack.c.l.b16 %v550
        %v1063 = vunpack.c.l.b16 %v551
        %v1064 = vunpack.c.l.b16 %v552
        %v1065 = vunpack.c.l.b16 %v553
        %v1066 = vunpack.c.l.b16 %v554
        %v1067 = vunpack.c.l.b16 %v555
        %v1068 = vunpack.c.l.b16 %v556
        %v1069 = vunpack.c.l.b16 %v557
        %v1070 = vunpack.c.l.b16 %v558
        %v1071 = vunpack.c.l.b16 %v559
        %v1072 = vunpack.c.l.b16 %v560
        %v1073 = vunpack.c.l.b16 %v561
        %v1074 = vunpack.c.l.b16 %v562
        %v1075 = vunpack.c.l.b16 %v563
        %v1076 = vunpack.c.l.b16 %v564
        %v1077 = vunpack.c.l.b16 %v565
        %v1078 = vunpack.c.l.b16 %v566
        %v1079 = vunpack.c.l.b16 %v567
        %v1080 = vunpack.c.l.b16 %v568
        %v1081 = vunpack.c.l.b16 %v569
        %v1082 = vunpack.c.l.b16 %v570
        %v1083 = vunpack.c.l.b16 %v571
        %v1084 = vunpack.c.l.b16 %v572
        %v1085 = vunpack.c.l.b16 %v573
        %v1086 = vunpack.c.l.b16 %v574
        %v1087 = vunpack.c.l.b16 %v575
        %v1088 = vunpack.c.l.b16 %v576
        %v1089 = vunpack.c.l.b16 %v577
        %v1090 = vunpack.c.l.b16 %v578
        %v1091 = vunpack.c.l.b16 %v579
        %v1092 = vunpack.c.l.b16 %v580
        %v1093 = vunpack.c.l.b16 %v581
        %v1094 = vunpack.c.l.b16 %v582
        %v1095 = vunpack.c.l.b16 %v583
        %v1096 = vunpack.c.l.b16 %v584
        %v1097 = vunpack.c.l.b16 %v585
        %v1098 = vunpack.c.l.b16 %v586
        %v1099 = vunpack.c.l.b16 %v587
        %v1100 = vunpack.c.l.b16 %v588
        %v1101 = vunpack.c.l.b16 %v589
        %v1102 = vunpack.c.l.b16 %v590
        %v1103 = vunpack.c.l.b16 %v591
        %v1104 = vunpack.c.l.b16 %v592
        %v1105 = vunpack.c.l.b16 %v593
        %v1106 = vunpack.c.l.b16 %v594
        %v1107 = vunpack.c.l.b16 %v595
        %v1108 = vunpack.c.l.b16 %v596
        %v1109 = vunpack.c.l.b16 %v597
        %v1110 = vunpack.c.l.b16 %v598
        %v1111 = vunpack.c.l.b16 %v599
        %v1112 = vunpack.c.l.b16 %v600
        %v1113 = vunpack.c.l.b16 %v601
        %v1114 = vunpack.c.l.b16 %v602
        %v1115 = vunpack.c.l.b16 %v603
        %v1116 = vunpack.c.l.b16 %v604
        %v1117 = vunpack.c.l.b16 %v605
        %v1118 = vunpack.c.l.b16 %v606
        %v1119 = vunpack.c.l.b16 %v607
        %v1120 = vunpack.c.l.b16 %v608
        %v1121 = vunpack.c.l.b16 %v609
        %v1122 = vunpack.c.l.b16 %v610
        %v1123 = vunpack.c.l.b16 %v611
        %v1124 = vunpack.c.l.b16 %v612
        %v1125 = vunpack.c.l.b16 %v613
        %v1126 = vunpack.c.l.b16 %v614
        %v1127 = vunpack.c.l.b16 %v615
        %v1128 = vunpack.c.l.b16 %v616
        %v1129 = vunpack.c.l.b16 %v617
        %v1130 = vunpack.c.l.b16 %v618
        %v1131 = vunpack.c.l.b16 %v619
        %v1132 = vunpack.c.l.b16 %v620
        %v1133 = vunpack.c.l.b16 %v621
        %v1134 = vunpack.c.l.b16 %v622
        %v1135 = vunpack.c.l.b16 %v623
        %v1136 = vunpack.c.l.b16 %v624
        %v1137 = vunpack.c.l.b16 %v625
        %v1138 = vunpack.c.l.b16 %v626
        %v1139 = vunpack.c.l.b16 %v627
        %v1140 = vunpack.c.l.b16 %v628
        %v1141 = vunpack.c.l.b16 %v629
        %v1142 = vunpack.c.l.b16 %v630
        %v1143 = vunpack.c.l.b16 %v631
        %v1144 = vunpack.c.l.b16 %v632
        %v1145 = vunpack.c.l.b16 %v633
        %v1146 = vunpack.c.l.b16 %v634
        %v1147 = vunpack.c.l.b16 %v635
        %v1148 = vunpack.c.l.b16 %v636
        %v1149 = vunpack.c.l.b16 %v637
        %v1150 = vunpack.c.l.b16 %v638
        %v1151 = vunpack.c.l.b16 %v639
        %v1152 = vunpack.c.l.b16 %v640
        %v1153 = vunpack.c.l.b16 %v641
        %v1154 = vunpack.c.l.b16 %v642
        %v1155 = vunpack.c.l.b16 %v643
        %v1156 = vunpack.c.l.b16 %v644
        %v1157 = vunpack.c.l.b16 %v645
        %v1158 = vunpack.c.l.b16 %v646
        %v1159 = vunpack.c.l.b16 %v647
        %v1160 = vunpack.c.l.b16 %v648
        %v1161 = vunpack.c.l.b16 %v649
        %v1162 = vunpack.c.l.b16 %v650
        %v1163 = vunpack.c.l.b16 %v651
        %v1164 = vunpack.c.l.b16 %v652
        %v1165 = vunpack.c.l.b16 %v653
        %v1166 = vpack.c.b16 %v911, %v910
        %v1167 = vpack.c.b16 %v913, %v912
        %v1168 = vpack.c.b16 %v915, %v914
        %v1169 = vpack.c.b16 %v917, %v916
        %v1170 = vpack.c.b16 %v919, %v918
        %v1171 = vpack.c.b16 %v921, %v920
        %v1172 = vpack.c.b16 %v923, %v922
        %v1173 = vpack.c.b16 %v925, %v924
        %v1174 = vpack.c.b16 %v927, %v926
        %v1175 = vpack.c.b16 %v929, %v928
        %v1176 = vpack.c.b16 %v931, %v930
        %v1177 = vpack.c.b16 %v933, %v932
        %v1178 = vpack.c.b16 %v935, %v934
        %v1179 = vpack.c.b16 %v937, %v936
        %v1180 = vpack.c.b16 %v939, %v938
        %v1181 = vpack.c.b16 %v941, %v940
        %v1182 = vpack.c.b16 %v943, %v942
        %v1183 = vpack.c.b16 %v945, %v944
        %v1184 = vpack.c.b16 %v947, %v946
        %v1185 = vpack.c.b16 %v949, %v948
        %v1186 = vpack.c.b16 %v951, %v950
        %v1187 = vpack.c.b16 %v953, %v952
        %v1188 = vpack.c.b16 %v955, %v954
        %v1189 = vpack.c.b16 %v957, %v956
        %v1190 = vpack.c.b16 %v959, %v958
        %v1191 = vpack.c.b16 %v961, %v960
        %v1192 = vpack.c.b16 %v963, %v962
        %v1193 = vpack.c.b16 %v965, %v964
        %v1194 = vpack.c.b16 %v967, %v966
        %v1195 = vpack.c.b16 %v969, %v968
        %v1196 = vpack.c.b16 %v971, %v970
        %v1197 = vpack.c.b16 %v973, %v972
        %v1198 = vpack.c.b16 %v975, %v974
        %v1199 = vpack.c.b16 %v977, %v976
        %v1200 = vpack.c.b16 %v979, %v978
        %v1201 = vpack.c.b16 %v981, %v980
        %v1202 = vpack.c.b16 %v983, %v982
        %v1203 = vpack.c.b16 %v985, %v984
        %v1204 = vpack.c.b16 %v987, %v986
        %v1205 = vpack.c.b16 %v989, %v988
        %v1206 = vpack.c.b16 %v991, %v990
        %v1207 = vpack.c.b16 %v993, %v992
        %v1208 = vpack.c.b16 %v995, %v994
        %v1209 = vpack.c.b16 %v997, %v996
        %v1210 = vpack.c.b16 %v999, %v998
        %v1211 = vpack.c.b16 %v1001, %v1000
        %v1212 = vpack.c.b16 %v1003, %v1002
        %v1213 = vpack.c.b16 %v1005, %v1004
        %v1214 = vpack.c.b16 %v1007, %v1006
        %v1215 = vpack.c.b16 %v1009, %v1008
        %v1216 = vpack.c.b16 %v1011, %v1010
        %v1217 = vpack.c.b16 %v1013, %v1012
        %v1218 = vpack.c.b16 %v1015, %v1014
        %v1219 = vpack.c.b16 %v1017, %v1016
        %v1220 = vpack.c.b16 %v1019, %v1018
        %v1221 = vpack.c.b16 %v1021, %v1020
        %v1222 = vpack.c.b16 %v1023, %v1022
        %v1223 = vpack.c.b16 %v1025, %v1024
        %v1224 = vpack.c.b16 %v1027, %v1026
        %v1225 = vpack.c.b16 %v1029, %v1028
        %v1226 = vpack.c.b16 %v1031, %v1030
        %v1227 = vpack.c.b16 %v1033, %v1032
        %v1228 = vpack.c.b16 %v1035, %v1034
        %v1229 = vpack.c.b16 %v1037, %v1036
        %v1230 = vpack.c.b16 %v1039, %v1038
        %v1231 = vpack.c.b16 %v1041, %v1040
        %v1232 = vpack.c.b16 %v1043, %v1042
        %v1233 = vpack.c.b16 %v1045, %v1044
        %v1234 = vpack.c.b16 %v1047, %v1046
        %v1235 = vpack.c.b16 %v1049, %v1048
        %v1236 = vpack.c.b16 %v1051, %v1050
        %v1237 = vpack.c.b16 %v1053, %v1052
        %v1238 = vpack.c.b16 %v1055, %v1054
        %v1239 = vpack.c.b16 %v1057, %v1056
        %v1240 = vpack.c.b16 %v1059, %v1058
        %v1241 = vpack.c.b16 %v1061, %v1060
        %v1242 = vpack.c.b16 %v1063, %v1062
        %v1243 = vpack.c.b16 %v1065, %v1064
        %v1244 = vpack.c.b16 %v1067, %v1066
        %v1245 = vpack.c.b16 %v1069, %v1068
        %v1246 = vpack.c.b16 %v1071, %v1070
        %v1247 = vpack.c.b16 %v1073, %v1072
        %v1248 = vpack.c.b16 %v1075, %v1074
        %v1249 = vpack.c.b16 %v1077, %v1076
        %v1250 = vpack.c.b16 %v1079, %v1078
        %v1251 = vpack.c.b16 %v1081, %v1080
        %v1252 = vpack.c.b16 %v1083, %v1082
        %v1253 = vpack.c.b16 %v1085, %v1084
        %v1254 = vpack.c.b16 %v1087, %v1086
        %v1255 = vpack.c.b16 %v1089, %v1088
        %v1256 = vpack.c.b16 %v1091, %v1090
        %v1257 = vpack.c.b16 %v1093, %v1092
        %v1258 = vpack.c.b16 %v1095, %v1094
        %v1259 = vpack.c.b16 %v1097, %v1096
        %v1260 = vpack.c.b16 %v1099, %v1098
        %v1261 = vpack.c.b16 %v1101, %v1100
        %v1262 = vpack.c.b16 %v1103, %v1102
        %v1263 = vpack.c.b16 %v1105, %v1104
        %v1264 = vpack.c.b16 %v1107, %v1106
        %v1265 = vpack.c.b16 %v1109, %v1108
        %v1266 = vpack.c.b16 %v1111, %v1110
        %v1267 = vpack.c.b16 %v1113, %v1112
        %v1268 = vpack.c.b16 %v1115, %v1114
        %v1269 = vpack.c.b16 %v1117, %v1116
        %v1270 = vpack.c.b16 %v1119, %v1118
        %v1271 = vpack.c.b16 %v1121, %v1120
        %v1272 = vpack.c.b16 %v1123, %v1122
        %v1273 = vpack.c.b16 %v1125, %v1124
        %v1274 = vpack.c.b16 %v1127, %v1126
        %v1275 = vpack.c.b16 %v1129, %v1128
        %v1276 = vpack.c.b16 %v1131, %v1130
        %v1277 = vpack.c.b16 %v1133, %v1132
        %v1278 = vpack.c.b16 %v1135, %v1134
        %v1279 = vpack.c.b16 %v1137, %v1136
        %v1280 = vpack.c.b16 %v1139, %v1138
        %v1281 = vpack.c.b16 %v1141, %v1140
        %v1282 = vpack.c.b16 %v1143, %v1142
        %v1283 = vpack.c.b16 %v1145, %v1144
        %v1284 = vpack.c.b16 %v1147, %v1146
        %v1285 = vpack.c.b16 %v1149, %v1148
        %v1286 = vpack.c.b16 %v1151, %v1150
        %v1287 = vpack.c.b16 %v1153, %v1152
        %v1288 = vpack.c.b16 %v1155, %v1154
        %v1289 = vpack.c.b16 %v1157, %v1156
        %v1290 = vpack.c.b16 %v1159, %v1158
        %v1291 = vpack.c.b16 %v1161, %v1160
        %v1292 = vpack.c.b16 %v1163, %v1162
        %v1293 = vpack.c.b16 %v1165, %v1164
        %1422 = vmatprep.subr.bf16.mxu0 0
        %1423 = vmatpush1.bf16.msra.mxu0 %v1173
        %1424 = vmatprep.subr.bf16.mxu0 0
        %1425 = vmatpush1.bf16.msra.mxu0 %v1172
        %1426 = vmatprep.subr.bf16.mxu0 0
        %1427 = vmatpush1.bf16.msra.mxu0 %v1171
        %1428 = vmatprep.subr.bf16.mxu0 0
        %1429 = vmatpush1.bf16.msra.mxu0 %v1170
        %1430 = vmatprep.subr.bf16.mxu0 0
        %1431 = vmatpush1.bf16.msra.mxu0 %v1169
        %1432 = vmatprep.subr.bf16.mxu0 0
        %1433 = vmatpush1.bf16.msra.mxu0 %v1168
        %1434 = vmatprep.subr.bf16.mxu0 0
        %1435 = vmatpush1.bf16.msra.mxu0 %v1167
        %1436 = vmatprep.subr.bf16.mxu0 0
        %1437 = vmatpush1.bf16.msra.mxu0 %v1166
        %1438 = vmatprep.subr.bf16.mxu0 0
        %1439 = vmatpush2.bf16.msra.mxu0 %v1181
        %1440 = vmatprep.subr.bf16.mxu0 0
        %1441 = vmatpush2.bf16.msra.mxu0 %v1180
        %1442 = vmatprep.subr.bf16.mxu0 0
        %1443 = vmatpush2.bf16.msra.mxu0 %v1179
        %1444 = vmatprep.subr.bf16.mxu0 0
        %1445 = vmatpush2.bf16.msra.mxu0 %v1178
        %1446 = vmatprep.subr.bf16.mxu0 0
        %1447 = vmatpush2.bf16.msra.mxu0 %v1177
        %1448 = vmatprep.subr.bf16.mxu0 0
        %1449 = vmatpush2.bf16.msra.mxu0 %v1176
        %1450 = vmatprep.subr.bf16.mxu0 0
        %1451 = vmatpush2.bf16.msra.mxu0 %v1175
        %1452 = vmatprep.subr.bf16.mxu0 0
        %1453 = vmatpush2.bf16.msra.mxu0 %v1174
        %1454 = vmatprep.mubr.bf16.mxu0 %v382
        %1455 = vmatmul.mubr.bf16.gmra.mxu0 %v381
        %v1456 = vpop.f32.mrf.mxu0
        %v1457 = vadd.f32 0.0, %v1456
        %v1458 = vpop.f32.mrf.mxu0
        %v1459 = vpop.f32.mrf.mxu0
        %v1460 = vpop.f32.mrf.mxu0
        %1461 = vdwg.mxu0
        %1462 = vmatprep.subr.bf16.mxu0 0
        %1463 = vmatpush1.bf16.msra.mxu0 %v1189
        %1464 = vmatprep.subr.bf16.mxu0 0
        %1465 = vmatpush1.bf16.msra.mxu0 %v1188
        %1466 = vmatprep.subr.bf16.mxu0 0
        %1467 = vmatpush1.bf16.msra.mxu0 %v1187
        %1468 = vmatprep.subr.bf16.mxu0 0
        %1469 = vmatpush1.bf16.msra.mxu0 %v1186
        %1470 = vmatprep.subr.bf16.mxu0 0
        %1471 = vmatpush1.bf16.msra.mxu0 %v1185
        %1472 = vmatprep.subr.bf16.mxu0 0
        %1473 = vmatpush1.bf16.msra.mxu0 %v1184
        %1474 = vmatprep.subr.bf16.mxu0 0
        %1475 = vmatpush1.bf16.msra.mxu0 %v1183
        %1476 = vmatprep.subr.bf16.mxu0 0
        %1477 = vmatpush1.bf16.msra.mxu0 %v1182
        %1478 = vmatprep.subr.bf16.mxu0 0
        %1479 = vmatpush2.bf16.msra.mxu0 %v1197
        %1480 = vmatprep.subr.bf16.mxu0 0
        %1481 = vmatpush2.bf16.msra.mxu0 %v1196
        %1482 = vmatprep.subr.bf16.mxu0 0
        %1483 = vmatpush2.bf16.msra.mxu0 %v1195
        %1484 = vmatprep.subr.bf16.mxu0 0
        %1485 = vmatpush2.bf16.msra.mxu0 %v1194
        %1486 = vmatprep.subr.bf16.mxu0 0
        %1487 = vmatpush2.bf16.msra.mxu0 %v1193
        %1488 = vmatprep.subr.bf16.mxu0 0
        %1489 = vmatpush2.bf16.msra.mxu0 %v1192
        %1490 = vmatprep.subr.bf16.mxu0 0
        %1491 = vmatpush2.bf16.msra.mxu0 %v1191
        %1492 = vmatprep.subr.bf16.mxu0 0
        %1493 = vmatpush2.bf16.msra.mxu0 %v1190
        %1494 = vmatprep.mubr.bf16.mxu0 %v384
        %1495 = vmatmul.mubr.bf16.gmra.mxu0 %v383
        %v1496 = vpop.f32.mrf.mxu0
        %v1497 = vadd.f32 %v1457, %v1496
        %v1498 = vpop.f32.mrf.mxu0
        %v1499 = vpop.f32.mrf.mxu0
        %v1500 = vpop.f32.mrf.mxu0
        %1501 = vdwg.mxu0
        %1502 = vmatprep.subr.bf16.mxu0 0
        %1503 = vmatpush1.bf16.msra.mxu0 %v1205
        %1504 = vmatprep.subr.bf16.mxu0 0
        %1505 = vmatpush1.bf16.msra.mxu0 %v1204
        %1506 = vmatprep.subr.bf16.mxu0 0
        %1507 = vmatpush1.bf16.msra.mxu0 %v1203
        %1508 = vmatprep.subr.bf16.mxu0 0
        %1509 = vmatpush1.bf16.msra.mxu0 %v1202
        %1510 = vmatprep.subr.bf16.mxu0 0
        %1511 = vmatpush1.bf16.msra.mxu0 %v1201
        %1512 = vmatprep.subr.bf16.mxu0 0
        %1513 = vmatpush1.bf16.msra.mxu0 %v1200
        %1514 = vmatprep.subr.bf16.mxu0 0
        %1515 = vmatpush1.bf16.msra.mxu0 %v1199
        %1516 = vmatprep.subr.bf16.mxu0 0
        %1517 = vmatpush1.bf16.msra.mxu0 %v1198
        %1518 = vmatprep.subr.bf16.mxu0 0
        %1519 = vmatpush2.bf16.msra.mxu0 %v1213
        %1520 = vmatprep.subr.bf16.mxu0 0
        %1521 = vmatpush2.bf16.msra.mxu0 %v1212
        %1522 = vmatprep.subr.bf16.mxu0 0
        %1523 = vmatpush2.bf16.msra.mxu0 %v1211
        %1524 = vmatprep.subr.bf16.mxu0 0
        %1525 = vmatpush2.bf16.msra.mxu0 %v1210
        %1526 = vmatprep.subr.bf16.mxu0 0
        %1527 = vmatpush2.bf16.msra.mxu0 %v1209
        %1528 = vmatprep.subr.bf16.mxu0 0
        %1529 = vmatpush2.bf16.msra.mxu0 %v1208
        %1530 = vmatprep.subr.bf16.mxu0 0
        %1531 = vmatpush2.bf16.msra.mxu0 %v1207
        %1532 = vmatprep.subr.bf16.mxu0 0
        %1533 = vmatpush2.bf16.msra.mxu0 %v1206
        %1534 = vmatprep.mubr.bf16.mxu0 %v386
        %1535 = vmatmul.mubr.bf16.gmra.mxu0 %v385
        %v1536 = vpop.f32.mrf.mxu0
        %v1537 = vadd.f32 %v1497, %v1536
        %v1538 = vpop.f32.mrf.mxu0
        %v1539 = vpop.f32.mrf.mxu0
        %v1540 = vpop.f32.mrf.mxu0
        %1541 = vdwg.mxu0
        %1542 = vmatprep.subr.bf16.mxu0 0
        %1543 = vmatpush1.bf16.msra.mxu0 %v1221
        %1544 = vmatprep.subr.bf16.mxu0 0
        %1545 = vmatpush1.bf16.msra.mxu0 %v1220
        %1546 = vmatprep.subr.bf16.mxu0 0
        %1547 = vmatpush1.bf16.msra.mxu0 %v1219
        %1548 = vmatprep.subr.bf16.mxu0 0
        %1549 = vmatpush1.bf16.msra.mxu0 %v1218
        %1550 = vmatprep.subr.bf16.mxu0 0
        %1551 = vmatpush1.bf16.msra.mxu0 %v1217
        %1552 = vmatprep.subr.bf16.mxu0 0
        %1553 = vmatpush1.bf16.msra.mxu0 %v1216
        %1554 = vmatprep.subr.bf16.mxu0 0
        %1555 = vmatpush1.bf16.msra.mxu0 %v1215
        %1556 = vmatprep.subr.bf16.mxu0 0
        %1557 = vmatpush1.bf16.msra.mxu0 %v1214
        %1558 = vmatprep.subr.bf16.mxu0 0
        %1559 = vmatpush2.bf16.msra.mxu0 %v1229
        %1560 = vmatprep.subr.bf16.mxu0 0
        %1561 = vmatpush2.bf16.msra.mxu0 %v1228
        %1562 = vmatprep.subr.bf16.mxu0 0
        %1563 = vmatpush2.bf16.msra.mxu0 %v1227
        %1564 = vmatprep.subr.bf16.mxu0 0
        %1565 = vmatpush2.bf16.msra.mxu0 %v1226
        %1566 = vmatprep.subr.bf16.mxu0 0
        %1567 = vmatpush2.bf16.msra.mxu0 %v1225
        %1568 = vmatprep.subr.bf16.mxu0 0
        %1569 = vmatpush2.bf16.msra.mxu0 %v1224
        %1570 = vmatprep.subr.bf16.mxu0 0
        %1571 = vmatpush2.bf16.msra.mxu0 %v1223
        %1572 = vmatprep.subr.bf16.mxu0 0
        %1573 = vmatpush2.bf16.msra.mxu0 %v1222
        %1574 = vmatprep.mubr.bf16.mxu0 %v388
        %1575 = vmatmul.mubr.bf16.gmra.mxu0 %v387
        %v1576 = vpop.f32.mrf.mxu0
        %v1577 = vadd.f32 %v1537, %v1576
        %v1578 = vpop.f32.mrf.mxu0
        %v1579 = vpop.f32.mrf.mxu0
        %v1580 = vpop.f32.mrf.mxu0
        %1581 = vdwg.mxu0
        %1582 = vmatprep.subr.bf16.mxu0 0
        %1583 = vmatpush1.bf16.msra.mxu0 %v1237
        %1584 = vmatprep.subr.bf16.mxu0 0
        %1585 = vmatpush1.bf16.msra.mxu0 %v1236
        %1586 = vmatprep.subr.bf16.mxu0 0
        %1587 = vmatpush1.bf16.msra.mxu0 %v1235
        %1588 = vmatprep.subr.bf16.mxu0 0
        %1589 = vmatpush1.bf16.msra.mxu0 %v1234
        %1590 = vmatprep.subr.bf16.mxu0 0
        %1591 = vmatpush1.bf16.msra.mxu0 %v1233
        %1592 = vmatprep.subr.bf16.mxu0 0
        %1593 = vmatpush1.bf16.msra.mxu0 %v1232
        %1594 = vmatprep.subr.bf16.mxu0 0
        %1595 = vmatpush1.bf16.msra.mxu0 %v1231
        %1596 = vmatprep.subr.bf16.mxu0 0
        %1597 = vmatpush1.bf16.msra.mxu0 %v1230
        %1598 = vmatprep.subr.bf16.mxu0 0
        %1599 = vmatpush2.bf16.msra.mxu0 %v1245
        %1600 = vmatprep.subr.bf16.mxu0 0
        %1601 = vmatpush2.bf16.msra.mxu0 %v1244
        %1602 = vmatprep.subr.bf16.mxu0 0
        %1603 = vmatpush2.bf16.msra.mxu0 %v1243
        %1604 = vmatprep.subr.bf16.mxu0 0
        %1605 = vmatpush2.bf16.msra.mxu0 %v1242
        %1606 = vmatprep.subr.bf16.mxu0 0
        %1607 = vmatpush2.bf16.msra.mxu0 %v1241
        %1608 = vmatprep.subr.bf16.mxu0 0
        %1609 = vmatpush2.bf16.msra.mxu0 %v1240
        %1610 = vmatprep.subr.bf16.mxu0 0
        %1611 = vmatpush2.bf16.msra.mxu0 %v1239
        %1612 = vmatprep.subr.bf16.mxu0 0
        %1613 = vmatpush2.bf16.msra.mxu0 %v1238
        %1614 = vmatprep.mubr.bf16.mxu0 %v390
        %1615 = vmatmul.mubr.bf16.gmra.mxu0 %v389
        %v1616 = vpop.f32.mrf.mxu0
        %v1617 = vadd.f32 %v1577, %v1616
        %v1618 = vpop.f32.mrf.mxu0
        %v1619 = vpop.f32.mrf.mxu0
        %v1620 = vpop.f32.mrf.mxu0
        %1621 = vdwg.mxu0
        %1622 = vmatprep.subr.bf16.mxu0 0
        %1623 = vmatpush1.bf16.msra.mxu0 %v1253
        %1624 = vmatprep.subr.bf16.mxu0 0
        %1625 = vmatpush1.bf16.msra.mxu0 %v1252
        %1626 = vmatprep.subr.bf16.mxu0 0
        %1627 = vmatpush1.bf16.msra.mxu0 %v1251
        %1628 = vmatprep.subr.bf16.mxu0 0
        %1629 = vmatpush1.bf16.msra.mxu0 %v1250
        %1630 = vmatprep.subr.bf16.mxu0 0
        %1631 = vmatpush1.bf16.msra.mxu0 %v1249
        %1632 = vmatprep.subr.bf16.mxu0 0
        %1633 = vmatpush1.bf16.msra.mxu0 %v1248
        %1634 = vmatprep.subr.bf16.mxu0 0
        %1635 = vmatpush1.bf16.msra.mxu0 %v1247
        %1636 = vmatprep.subr.bf16.mxu0 0
        %1637 = vmatpush1.bf16.msra.mxu0 %v1246
        %1638 = vmatprep.subr.bf16.mxu0 0
        %1639 = vmatpush2.bf16.msra.mxu0 %v1261
        %1640 = vmatprep.subr.bf16.mxu0 0
        %1641 = vmatpush2.bf16.msra.mxu0 %v1260
        %1642 = vmatprep.subr.bf16.mxu0 0
        %1643 = vmatpush2.bf16.msra.mxu0 %v1259
        %1644 = vmatprep.subr.bf16.mxu0 0
        %1645 = vmatpush2.bf16.msra.mxu0 %v1258
        %1646 = vmatprep.subr.bf16.mxu0 0
        %1647 = vmatpush2.bf16.msra.mxu0 %v1257
        %1648 = vmatprep.subr.bf16.mxu0 0
        %1649 = vmatpush2.bf16.msra.mxu0 %v1256
        %1650 = vmatprep.subr.bf16.mxu0 0
        %1651 = vmatpush2.bf16.msra.mxu0 %v1255
        %1652 = vmatprep.subr.bf16.mxu0 0
        %1653 = vmatpush2.bf16.msra.mxu0 %v1254
        %1654 = vmatprep.mubr.bf16.mxu0 %v392
        %1655 = vmatmul.mubr.bf16.gmra.mxu0 %v391
        %v1656 = vpop.f32.mrf.mxu0
        %v1657 = vadd.f32 %v1617, %v1656
        %v1658 = vpop.f32.mrf.mxu0
        %v1659 = vpop.f32.mrf.mxu0
        %v1660 = vpop.f32.mrf.mxu0
        %1661 = vdwg.mxu0
        %1662 = vmatprep.subr.bf16.mxu0 0
        %1663 = vmatpush1.bf16.msra.mxu0 %v1269
        %1664 = vmatprep.subr.bf16.mxu0 0
        %1665 = vmatpush1.bf16.msra.mxu0 %v1268
        %1666 = vmatprep.subr.bf16.mxu0 0
        %1667 = vmatpush1.bf16.msra.mxu0 %v1267
        %1668 = vmatprep.subr.bf16.mxu0 0
        %1669 = vmatpush1.bf16.msra.mxu0 %v1266
        %1670 = vmatprep.subr.bf16.mxu0 0
        %1671 = vmatpush1.bf16.msra.mxu0 %v1265
        %1672 = vmatprep.subr.bf16.mxu0 0
        %1673 = vmatpush1.bf16.msra.mxu0 %v1264
        %1674 = vmatprep.subr.bf16.mxu0 0
        %1675 = vmatpush1.bf16.msra.mxu0 %v1263
        %1676 = vmatprep.subr.bf16.mxu0 0
        %1677 = vmatpush1.bf16.msra.mxu0 %v1262
        %1678 = vmatprep.subr.bf16.mxu0 0
        %1679 = vmatpush2.bf16.msra.mxu0 %v1277
        %1680 = vmatprep.subr.bf16.mxu0 0
        %1681 = vmatpush2.bf16.msra.mxu0 %v1276
        %1682 = vmatprep.subr.bf16.mxu0 0
        %1683 = vmatpush2.bf16.msra.mxu0 %v1275
        %1684 = vmatprep.subr.bf16.mxu0 0
        %1685 = vmatpush2.bf16.msra.mxu0 %v1274
        %1686 = vmatprep.subr.bf16.mxu0 0
        %1687 = vmatpush2.bf16.msra.mxu0 %v1273
        %1688 = vmatprep.subr.bf16.mxu0 0
        %1689 = vmatpush2.bf16.msra.mxu0 %v1272
        %1690 = vmatprep.subr.bf16.mxu0 0
        %1691 = vmatpush2.bf16.msra.mxu0 %v1271
        %1692 = vmatprep.subr.bf16.mxu0 0
        %1693 = vmatpush2.bf16.msra.mxu0 %v1270
        %1694 = vmatprep.mubr.bf16.mxu0 %v394
        %1695 = vmatmul.mubr.bf16.gmra.mxu0 %v393
        %v1696 = vpop.f32.mrf.mxu0
        %v1697 = vadd.f32 %v1657, %v1696
        %v1698 = vpop.f32.mrf.mxu0
        %v1699 = vpop.f32.mrf.mxu0
        %v1700 = vpop.f32.mrf.mxu0
        %1701 = vdwg.mxu0
        %1702 = vmatprep.subr.bf16.mxu0 0
        %1703 = vmatpush1.bf16.msra.mxu0 %v1285
        %1704 = vmatprep.subr.bf16.mxu0 0
        %1705 = vmatpush1.bf16.msra.mxu0 %v1284
        %1706 = vmatprep.subr.bf16.mxu0 0
        %1707 = vmatpush1.bf16.msra.mxu0 %v1283
        %1708 = vmatprep.subr.bf16.mxu0 0
        %1709 = vmatpush1.bf16.msra.mxu0 %v1282
        %1710 = vmatprep.subr.bf16.mxu0 0
        %1711 = vmatpush1.bf16.msra.mxu0 %v1281
        %1712 = vmatprep.subr.bf16.mxu0 0
        %1713 = vmatpush1.bf16.msra.mxu0 %v1280
        %1714 = vmatprep.subr.bf16.mxu0 0
        %1715 = vmatpush1.bf16.msra.mxu0 %v1279
        %1716 = vmatprep.subr.bf16.mxu0 0
        %1717 = vmatpush1.bf16.msra.mxu0 %v1278
        %1718 = vmatprep.subr.bf16.mxu0 0
        %1719 = vmatpush2.bf16.msra.mxu0 %v1293
        %1720 = vmatprep.subr.bf16.mxu0 0
        %1721 = vmatpush2.bf16.msra.mxu0 %v1292
        %1722 = vmatprep.subr.bf16.mxu0 0
        %1723 = vmatpush2.bf16.msra.mxu0 %v1291
        %1724 = vmatprep.subr.bf16.mxu0 0
        %1725 = vmatpush2.bf16.msra.mxu0 %v1290
        %1726 = vmatprep.subr.bf16.mxu0 0
        %1727 = vmatpush2.bf16.msra.mxu0 %v1289
        %1728 = vmatprep.subr.bf16.mxu0 0
        %1729 = vmatpush2.bf16.msra.mxu0 %v1288
        %1730 = vmatprep.subr.bf16.mxu0 0
        %1731 = vmatpush2.bf16.msra.mxu0 %v1287
        %1732 = vmatprep.subr.bf16.mxu0 0
        %1733 = vmatpush2.bf16.msra.mxu0 %v1286
        %1734 = vmatprep.mubr.bf16.mxu0 %v396
        %1735 = vmatmul.mubr.bf16.gmra.mxu0 %v395
        %v1736 = vpop.f32.mrf.mxu0
        %v1737 = vadd.f32 %v1697, %v1736
        %v1738 = vpop.f32.mrf.mxu0
        %v1739 = vpop.f32.mrf.mxu0
        %v1740 = vpop.f32.mrf.mxu0
        %1741 = vdwg.mxu0
        %v1742 = vadd.f32 %v397, %v1737
        %1743 = vst [vmem:[#allocation2] sm:$0x1] %v1742
        %p1744 = scmp.eq.s32.totalorder %s22, 3
        // Predicated region
        $region61: #{hybrid_convnet_forward.3} parent=39 // pred_check
          %p1745 = pneg %p1744
        $region62: #{hybrid_convnet_forward.3} parent=39 // pred_check_branch
          %1747 = sbr.rel (%p1745) target = $region64
        $region63: #{hybrid_convnet_forward.3} parent=39 // pred_region
          %v1748 = vld [vmem:[#allocation2] sm:$0x1]
          %v1749 = vld [vmem:[#allocation6] sm:$0x1]
          %v1750 = vadd.f32 %v1748, %v1749
          %v1751 = vmax.f32 %v1750, 0.0
          %v1752 = vld [vmem:[#allocation8] sm:$0xff]
          %v1753 = vld [vmem:[#allocation8 + $0x8] sm:$0xff]
          %v1754 = vld [vmem:[#allocation8 + $0x10] sm:$0xff]
          %v1755 = vld [vmem:[#allocation8 + $0x18] sm:$0xff]
          %v1756 = vld [vmem:[#allocation8 + $0x20] sm:$0xff]
          %v1757 = vld [vmem:[#allocation8 + $0x28] sm:$0xff]
          %v1758 = vld [vmem:[#allocation8 + $0x30] sm:$0xff]
          %v1759 = vld [vmem:[#allocation8 + $0x38] sm:$0xff]
          %v1760 = vld [vmem:[#allocation8 + $0x40] sm:$0xff]
          %v1761 = vld [vmem:[#allocation8 + $0x48] sm:$0xff]
          %v1762 = vld [vmem:[#allocation8 + $0x50] sm:$0xff]
          %v1763 = vld [vmem:[#allocation8 + $0x58] sm:$0xff]
          %v1764 = vld [vmem:[#allocation8 + $0x60] sm:$0xff]
          %v1765 = vld [vmem:[#allocation8 + $0x68] sm:$0xff]
          %v1766 = vld [vmem:[#allocation8 + $0x70] sm:$0xff]
          %v1767 = vld [vmem:[#allocation8 + $0x78] sm:$0xff]
          %v1768 = vld [vmem:[#allocation9] sm:$0x1]
          %1769 = vmatprep.subr.mxu0 0.0
          %1770 = vmatpush1.msra.mxu0 %v1767
          %1771 = vmatprep.subr.mxu0 0.0
          %1772 = vmatpush1.msra.mxu0 %v1766
          %1773 = vmatprep.subr.mxu0 0.0
          %1774 = vmatpush1.msra.mxu0 %v1765
          %1775 = vmatprep.subr.mxu0 0.0
          %1776 = vmatpush1.msra.mxu0 %v1764
          %1777 = vmatprep.subr.mxu0 0.0
          %1778 = vmatpush1.msra.mxu0 %v1763
          %1779 = vmatprep.subr.mxu0 0.0
          %1780 = vmatpush1.msra.mxu0 %v1762
          %1781 = vmatprep.subr.mxu0 0.0
          %1782 = vmatpush1.msra.mxu0 %v1761
          %1783 = vmatprep.subr.mxu0 0.0
          %1784 = vmatpush1.msra.mxu0 %v1760
          %1785 = vmatprep.subr.mxu0 0.0
          %1786 = vmatpush1.msra.mxu0 %v1759
          %1787 = vmatprep.subr.mxu0 0.0
          %1788 = vmatpush1.msra.mxu0 %v1758
          %1789 = vmatprep.subr.mxu0 0.0
          %1790 = vmatpush1.msra.mxu0 %v1757
          %1791 = vmatprep.subr.mxu0 0.0
          %1792 = vmatpush1.msra.mxu0 %v1756
          %1793 = vmatprep.subr.mxu0 0.0
          %1794 = vmatpush1.msra.mxu0 %v1755
          %1795 = vmatprep.subr.mxu0 0.0
          %1796 = vmatpush1.msra.mxu0 %v1754
          %1797 = vmatprep.subr.mxu0 0.0
          %1798 = vmatpush1.msra.mxu0 %v1753
          %1799 = vmatprep.subr.mxu0 0.0
          %1800 = vmatpush1.msra.mxu0 %v1752
          %1801 = vmatprep.subr.mxu0 0.0
          %1802 = vmatpush2.msra.mxu0 0.0
          %1803 = vmatprep.subr.mxu0 0.0
          %1804 = vmatpush2.msra.mxu0 0.0
          %1805 = vmatprep.subr.mxu0 0.0
          %1806 = vmatpush2.msra.mxu0 0.0
          %1807 = vmatprep.subr.mxu0 0.0
          %1808 = vmatpush2.msra.mxu0 0.0
          %1809 = vmatprep.subr.mxu0 0.0
          %1810 = vmatpush2.msra.mxu0 0.0
          %1811 = vmatprep.subr.mxu0 0.0
          %1812 = vmatpush2.msra.mxu0 0.0
          %1813 = vmatprep.subr.mxu0 0.0
          %1814 = vmatpush2.msra.mxu0 0.0
          %1815 = vmatprep.subr.mxu0 0.0
          %1816 = vmatpush2.msra.mxu0 0.0
          %1817 = vmatprep.subr.mxu0 0.0
          %1818 = vmatpush2.msra.mxu0 0.0
          %1819 = vmatprep.subr.mxu0 0.0
          %1820 = vmatpush2.msra.mxu0 0.0
          %1821 = vmatprep.subr.mxu0 0.0
          %1822 = vmatpush2.msra.mxu0 0.0
          %1823 = vmatprep.subr.mxu0 0.0
          %1824 = vmatpush2.msra.mxu0 0.0
          %1825 = vmatprep.subr.mxu0 0.0
          %1826 = vmatpush2.msra.mxu0 0.0
          %1827 = vmatprep.subr.mxu0 0.0
          %1828 = vmatpush2.msra.mxu0 0.0
          %1829 = vmatprep.subr.mxu0 0.0
          %1830 = vmatpush2.msra.mxu0 0.0
          %1831 = vmatprep.subr.mxu0 0.0
          %1832 = vmatpush2.msra.mxu0 0.0
          %1833 = vmatprep.mubr.f32.mxu0 0.0
          %1834 = vmatmul.mubr.f32.gmra.mxu0 %v1751
          %v1835 = vpop.f32.mrf.mxu0
          %v1836 = vadd.f32 %v1768, %v1835
          %v1837 = vpop.f32.mrf.mxu0
          %1838 = vdwg.mxu0
          %1839 = vst [vmem:[#allocation11] sm:$0x1] %v1836
        $region64: #{hybrid_convnet_forward.3} parent=39 // pred_fallthru
          _
        // Predicated region
        $region65: #{hybrid_convnet_forward.3} parent=39 // pred_check
          %p1840 = pneg %p150
        $region66: #{hybrid_convnet_forward.3} parent=39 // pred_check_branch
          %1842 = sbr.rel (%p1840) target = $region68
        $region67: #{hybrid_convnet_forward.3} parent=39 // pred_region
          %s1844 = ssub.s32 16, 16
          %1845 = vsyncadd [#allocation5], %s1844
          %s1847 = sshll.u32 [#allocation11], 4
          %s1848 = int_to_ptr.vmem [resolvable:$true] %s1847
          %1850 = dma.vmem_to_hbm [thread:$0]  %s1848, 16, %s5, [#allocation5]
        $region68: #{hybrid_convnet_forward.3} parent=39 // pred_fallthru
          _
        // Predicated region
        $region69: #{hybrid_convnet_forward.3} parent=39 // pred_check
          %p1851 = pneg %p150
        $region70: #{hybrid_convnet_forward.3} parent=39 // pred_check_branch
          %1853 = sbr.rel (%p1851) target = $region72
        $region71: #{hybrid_convnet_forward.3} parent=39 // pred_region
          %1854 = dma.done [#allocation5], 16
        $region72: #{hybrid_convnet_forward.3} parent=39 // pred_fallthru
          _
      $region40: #{hybrid_convnet_forward.3} parent=5 // pred_fallthru
        _
      %p1855 = scmp.le.s32.totalorder 2, %s17
      // Predicated region
      $region73: #{hybrid_convnet_forward.3} parent=5 // pred_check
        %p1856 = pneg %p1855
      $region74: #{hybrid_convnet_forward.3} parent=5 // pred_check_branch
        %1858 = sbr.rel (%p1856) target = $region76
      $region75: #{hybrid_convnet_forward.3} parent=5 // pred_region
        %s1859 = ssub.s32 %s17, 2
      $region76: #{hybrid_convnet_forward.3} parent=5 // pred_fallthru
        _
    $region6: #{hybrid_convnet_forward.3} parent=1 // loop_footer
      %s21 = sadd.s32 1, %s17
    $region7: #{hybrid_convnet_forward.3} parent=1 // loop_footer_branch
      %16 = sbr.rel target = $region3
    $region8: #{hybrid_convnet_forward.3} parent=1 // loop_exit
      _
    %1860 = vsyncpa [#allocation4], 1
    %s1861 = scalar_lea.sflag [#allocation4], 1
    %1862 = vsyncpa %s1861, 1
    %1863 = vsyncpa [#allocation7], 1
    %1864 = vsyncpa [#allocation10], 1
    %1865 = vsyncpa [#allocation5], 1
    %s1866 = scalar_lea.sflag [#allocation5], 1
    %1867 = vsyncpa %s1866, 1

</llo_original>
